<compile_context>
chip_gen: v5e
topology: v5e:2x2
jax: 0.10.0
libtpu: 0.0.40
codegen_flags: <defaults>
</compile_context>

<pallas_src>
import jax
import jax.numpy as jnp
from jax import lax
from jax.experimental import pallas as pl
from jax.experimental.pallas import tpu as pltpu


# ----------------------------------------------------------------------------
# Pallas kernel
# ----------------------------------------------------------------------------
def _fallback_anomaly_kernel(
        x_ref,                                   # (T, Bb, 1)
        whh0_ref, wx0f_ref, wx0b_ref, b0_ref,    # layer 0 (fused fwd+bwd)
        w1f_ref, whh1f_ref, b1f_ref,             # layer 1 fwd
        w1b_ref, b1b_ref,                        # layer 1 bwd (single step)
        wdecf_ref, wdecb_ref, bdec_ref,          # decoder head (split halves)
        wrecf_ref, wrecb_ref, brec_ref,          # reconstructor head (split)
        scores_ref, recon_ref,                   # outputs: (Bb,1), (Bb,Tp)
        h0_ref, xg1_ref):                        # scratch: (T*Bb,2H), (Tc*Bb,4H)
    f32 = jnp.float32
    T, Bb, _ = x_ref.shape
    H = whh1f_ref.shape[0]
    H2, H3, H4, H6, H8 = 2 * H, 3 * H, 4 * H, 6 * H, 8 * H
    Tc = xg1_ref.shape[0] // Bb
    # TODO(synk): sweep unroll (4/8/full) per shape; watch vreg spills.
    unroll = True if T <= 16 else 4

    # ---------------- layer 0: fused fwd + bwd recurrence --------------------
    # Carried state is [h_fwd | h_bwd] (Bb, 2H); W_hh is block-diagonal
    # (2H, 8H) with gate columns interleaved as [i_f,i_b,f_f,f_b,o_f,o_b,g_f,g_b]
    # so every slice below sits on a 2H lane boundary.
    wx0f = wx0f_ref[...]                                      # (1, 8H)
    wx0b = wx0b_ref[...]                                      # (1, 8H)
    b0 = jnp.broadcast_to(b0_ref[...], (Bb, H8))              # hoisted broadcast
    lane = jax.lax.broadcasted_iota(jnp.int32, (Bb, H2), 1)
    fwd_mask = lane < H                                       # cols [0, H)
    bwd_mask = lane >= H                                      # cols [H, 2H)
    zeros2 = jnp.zeros((Bb, H2), f32)

    def l0_body(s, carry):
        hcat, ccat = carry
        xf = x_ref[s]                                         # (Bb,1)  t = s
        xb = x_ref[T - 1 - s]                                 # (Bb,1)  t = T-1-s
        g = jnp.dot(hcat, whh0_ref[...], preferred_element_type=f32)
        g = g + xf * wx0f + xb * wx0b + b0                    # (Bb, 8H)
        sig = jax.nn.sigmoid(g[:, :H6])                       # one EUP launch (i,f,o)
        i_g = sig[:, 0:H2]
        f_g = sig[:, H2:H4]
        o_g = sig[:, H4:H6]
        g_g = jnp.tanh(g[:, H6:])
        ccat = f_g * ccat + i_g * g_g
        hcat = o_g * jnp.tanh(ccat)
        # fwd half -> row block s, bwd half -> row block T-1-s (masked stores,
        # no lane extraction / rotation).
        rf = pl.multiple_of(s * Bb, Bb)
        rb = pl.multiple_of((T - 1 - s) * Bb, Bb)
        pltpu.store(h0_ref.at[pl.ds(rf, Bb), :], hcat, mask=fwd_mask)
        pltpu.store(h0_ref.at[pl.ds(rb, Bb), :], hcat, mask=bwd_mask)
        return hcat, ccat

    lax.fori_loop(0, T, l0_body, (zeros2, zeros2), unroll=unroll)

    # ---------------- layer 1 forward: chunked projection + recurrence -------
    b1f = jnp.broadcast_to(b1f_ref[...], (Bb, H4))
    h1 = jnp.zeros((Bb, H), f32)
    c1 = jnp.zeros((Bb, H), f32)
    n_chunks = (T + Tc - 1) // Tc
    for ci in range(n_chunks):                                # static python loop
        t0 = ci * Tc
        tc = min(Tc, T - t0)
        # Large, MXU-friendly (tc*Bb, 2H) @ (2H, 4H) input projection.
        xg1_ref[0:tc * Bb, :] = jnp.dot(
            h0_ref[t0 * Bb:(t0 + tc) * Bb, :], w1f_ref[...],
            preferred_element_type=f32)

        def l1_body(j, carry):
            h, c = carry
            r = pl.multiple_of(j * Bb, Bb)
            g = (xg1_ref[pl.ds(r, Bb), :] + b1f
                 + jnp.dot(h, whh1f_ref[...], preferred_element_type=f32))
            sig = jax.nn.sigmoid(g[:, :H3])                   # gate order [i,f,o,g]
            i_g = sig[:, 0:H]
            f_g = sig[:, H:H2]
            o_g = sig[:, H2:H3]
            g_g = jnp.tanh(g[:, H3:])
            c = f_g * c + i_g * g_g
            h = o_g * jnp.tanh(c)
            return h, c

        h1, c1 = lax.fori_loop(0, tc, l1_body, (h1, c1), unroll=unroll)

    # ---------------- layer 1 backward: single step at t = T-1 ---------------
    # NOTE: the model only consumes lstm_out[:, -1, :].  For the backward
    # direction that is its FIRST step (input t = T-1, zero initial state), so
    # the W_hh term vanishes and the rest of the backward pass is intentionally
    # NOT computed.  Any future use of the full layer-1 output would need the
    # full recurrence here.
    h0_last = h0_ref[(T - 1) * Bb:T * Bb, :]                  # (Bb, 2H)
    gb = (jnp.dot(h0_last, w1b_ref[...], preferred_element_type=f32)
          + jnp.broadcast_to(b1b_ref[...], (Bb, H4)))
    sigb = jax.nn.sigmoid(gb[:, :H3])
    cb = sigb[:, 0:H] * jnp.tanh(gb[:, H3:])                  # f * c0 = 0
    h1b = sigb[:, H2:H3] * jnp.tanh(cb)

    # ---------------- heads (split weights instead of concat) ----------------
    scores_ref[...] = jax.nn.sigmoid(
        jnp.dot(h1, wdecf_ref[...], preferred_element_type=f32)
        + jnp.dot(h1b, wdecb_ref[...], preferred_element_type=f32)
        + bdec_ref[...])
    recon_ref[...] = (
        jnp.dot(h1, wrecf_ref[...], preferred_element_type=f32)
        + jnp.dot(h1b, wrecb_ref[...], preferred_element_type=f32)
        + brec_ref[...])


# ----------------------------------------------------------------------------
# Wrapper
# ----------------------------------------------------------------------------
def fallback_anomaly_forward(x, params, *, batch_tile=8, time_chunk=64):
    """x: (B, T, 1) f32. Returns (anomaly_scores (B,), reconstruction (B, T, 1))."""
    assert batch_tile % 8 == 0
    B, T, _ = x.shape
    p = params
    H = p["whh0f"].shape[0]
    Bb = batch_tile
    Bp = ((B + Bb - 1) // Bb) * Bb
    Tp = ((T + 127) // 128) * 128                 # lane-dense recon output
    Tc = min(time_chunk, T)

    # input: time-major (T, Bp, 1) so each step reads one (Bb, 1) column
    x_in = jnp.pad(jnp.transpose(x[..., 0]), ((0, 0), (0, Bp - B)))[..., None]

    # weight prep: PyTorch gate order [i,f,g,o] -> [i,f,o,g]; layer-0 fwd/bwd
    # interleave + block-diagonal packing for the fused cell.
    def perm_ifog(w):
        h = w.shape[-1] // 4
        return jnp.concatenate([w[:, :2 * h], w[:, 3 * h:], w[:, 2 * h:3 * h]],
                               axis=1)

    def interleave(wf, wb):   # -> [i_f,i_b, f_f,f_b, o_f,o_b, g_f,g_b]
        h = wf.shape[-1] // 4
        cols = []
        for k in range(4):
            cols += [wf[:, k * h:(k + 1) * h], wb[:, k * h:(k + 1) * h]]
        return jnp.concatenate(cols, axis=1)

    z_h = jnp.zeros((H, 4 * H), jnp.float32)
    z_1 = jnp.zeros((1, 4 * H), jnp.float32)
    whh0_bd = interleave(
        jnp.concatenate([perm_ifog(p["whh0f"]), z_h], axis=0),
        jnp.concatenate([z_h, perm_ifog(p["whh0b"])], axis=0))       # (2H, 8H)
    wx0f = interleave(perm_ifog(p["wih0f"]), z_1)                    # (1, 8H)
    wx0b = interleave(z_1, perm_ifog(p["wih0b"]))                    # (1, 8H)
    b0 = interleave(perm_ifog(p["b0f"]), perm_ifog(p["b0b"]))        # (1, 8H)

    w1f = perm_ifog(p["wih1f"])
    whh1f = perm_ifog(p["whh1f"])
    b1f = perm_ifog(p["b1f"])
    w1b = perm_ifog(p["wih1b"])
    b1b = perm_ifog(p["b1b"])

    wrec = jnp.pad(p["wrec"], ((0, 0), (0, Tp - T)))
    brec = jnp.pad(p["brec"], ((0, 0), (0, Tp - T)))

    args = (x_in,
            whh0_bd, wx0f, wx0b, b0,
            w1f, whh1f, b1f, w1b, b1b,
            p["wdec"][:H], p["wdec"][H:], p["bdec"],
            wrec[:H], wrec[H:], brec)

    def full(shape):
        nd = len(shape)
        return pl.BlockSpec(shape, lambda i, _nd=nd: (0,) * _nd)

    in_specs = [pl.BlockSpec((T, Bb, 1), lambda i: (0, i, 0))] + [
        full(a.shape) for a in args[1:]]
    out_specs = (pl.BlockSpec((Bb, 1), lambda i: (i, 0)),
                 pl.BlockSpec((Bb, Tp), lambda i: (i, 0)))
    scratch_shapes = [pltpu.VMEM((T * Bb, 2 * H), jnp.float32),     # h0 (fwd|bwd)
                      pltpu.VMEM((Tc * Bb, 4 * H), jnp.float32)]    # xg1 chunk

    # rough VMEM budget: double-buffered I/O tiles + weights + scratch + slack
    def padded(shape, d=4):
        lead = 1
        for s in shape[:-2]:
            lead *= s
        r = shape[-2] if len(shape) >= 2 else 1
        c = shape[-1]
        return lead * (-(-r // 8) * 8) * (-(-c // 128) * 128) * d

    est = (2 * sum(padded(a.shape) for a in args)
           + 2 * (padded((Bb, 1)) + padded((Bb, Tp)))
           + padded((T * Bb, 2 * H)) + padded((Tc * Bb, 4 * H))
           + (4 << 20))
    vmem_limit = int(min(max(est, 16 << 20), 64 << 20))   # stay <= v7x physical

    scores, recon = pl.pallas_call(
        _fallback_anomaly_kernel,
        grid=(Bp // Bb,),
        out_shape=(jax.ShapeDtypeStruct((Bp, 1), jnp.float32),
                   jax.ShapeDtypeStruct((Bp, Tp), jnp.float32)),
        in_specs=in_specs,
        out_specs=out_specs,
        scratch_shapes=scratch_shapes,
        compiler_params=pltpu.CompilerParams(
            dimension_semantics=("parallel",),
            vmem_limit_bytes=vmem_limit),
    )(*args)

    anomaly_scores = scores[:B, 0]                                   # torch .squeeze()
    reconstruction = jnp.broadcast_to(recon[:B, :T, None], x.shape)  # .expand_as(x)
    return anomaly_scores, reconstruction


# ----------------------------------------------------------------------------
# Deterministic synthetic parameters (PyTorch-style uniform init ranges)
# ----------------------------------------------------------------------------
def init_params(key, seq_len, hidden_dim):
    H = hidden_dim // 2
    bound = 1.0 / (H ** 0.5)
    ks = jax.random.split(key, 24)
    u = lambda k, shape, b: jax.random.uniform(k, shape, jnp.float32, -b, b)
    p = {}
    i = 0
    for name, in_dim in [("0f", 1), ("0b", 1), ("1f", 2 * H), ("1b", 2 * H)]:
        p[f"wih{name}"] = u(ks[i], (in_dim, 4 * H), bound); i += 1
        p[f"whh{name}"] = u(ks[i], (H, 4 * H), bound); i += 1
        # fold PyTorch's b_ih + b_hh into one bias
        p[f"b{name}"] = u(ks[i], (1, 4 * H), bound) + u(ks[i + 1], (1, 4 * H), bound)
        i += 2
    b_head = 1.0 / ((2 * H) ** 0.5)
    p["wdec"] = u(ks[i], (2 * H, 1), b_head); i += 1
    p["bdec"] = u(ks[i], (1, 1), b_head); i += 1
    p["wrec"] = u(ks[i], (2 * H, seq_len), b_head); i += 1
    p["brec"] = u(ks[i], (1, seq_len), b_head); i += 1
    return p


# ----------------------------------------------------------------------------
# Pure-JAX reference (mirrors nn.LSTM bidirectional semantics) for verification
# ----------------------------------------------------------------------------
def _reference_forward(x, p):
    B, T, _ = x.shape
    H = p["whh0f"].shape[0]
    xs = x[..., 0]

    def cell(xg, h, c, whh, b):
        g = xg + h @ whh + b
        i = jax.nn.sigmoid(g[:, :H]); f = jax.nn.sigmoid(g[:, H:2 * H])
        gg = jnp.tanh(g[:, 2 * H:3 * H]); o = jax.nn.sigmoid(g[:, 3 * H:])
        c = f * c + i * gg
        return o * jnp.tanh(c), c

    z = jnp.zeros((B, H), jnp.float32)
    h, c = z, z
    h0f = []
    for t in range(T):
        h, c = cell(xs[:, t:t + 1] * p["wih0f"], h, c, p["whh0f"], p["b0f"])
        h0f.append(h)
    h, c = z, z
    h0b = [None] * T
    for t in range(T - 1, -1, -1):
        h, c = cell(xs[:, t:t + 1] * p["wih0b"], h, c, p["whh0b"], p["b0b"])
        h0b[t] = h
    h, c = z, z
    for t in range(T):
        inp = jnp.concatenate([h0f[t], h0b[t]], -1)
        h, c = cell(inp @ p["wih1f"], h, c, p["whh1f"], p["b1f"])
    h1f_last = h
    h, c = z, z
    h1b = [None] * T
    for t in range(T - 1, -1, -1):
        inp = jnp.concatenate([h0f[t], h0b[t]], -1)
        h, c = cell(inp @ p["wih1b"], h, c, p["whh1b"], p["b1b"])
        h1b[t] = h
    feat = jnp.concatenate([h1f_last, h1b[T - 1]], -1)
    scores = jax.nn.sigmoid(feat @ p["wdec"] + p["bdec"])[:, 0]
    recon = jnp.broadcast_to((feat @ p["wrec"] + p["brec"])[:, :, None], x.shape)
    return scores, recon


if __name__ == "__main__":
    B, SEQ_LEN, HIDDEN_DIM = 2, 8, 32          # small shapes; H = 16, 4H = 64
    key = jax.random.PRNGKey(0)
    kx, kp = jax.random.split(key)
    x = jax.random.normal(kx, (B, SEQ_LEN, 1), jnp.float32)
    params = init_params(kp, SEQ_LEN, HIDDEN_DIM)

    scores, recon = fallback_anomaly_forward(x, params)
    jax.block_until_ready((scores, recon))

    ref_scores, ref_recon = _reference_forward(x, params)
    assert scores.shape == (B,) and recon.shape == (B, SEQ_LEN, 1)
    assert jnp.allclose(scores, ref_scores, atol=1e-4, rtol=1e-4)
    assert jnp.allclose(recon, ref_recon, atol=1e-4, rtol=1e-4)

    print("KERNEL_OK")
</pallas_src>

<mosaic_0001>
module attributes {stable_mosaic.version = 11 : i64} {
  func.func @_fallback_anomaly_kernel(%arg0: i32, %arg1: memref<8x8x1xf32, #tpu.memory_space<vmem>>, %arg2: memref<32x128xf32, #tpu.memory_space<vmem>>, %arg3: memref<1x128xf32, #tpu.memory_space<vmem>>, %arg4: memref<1x128xf32, #tpu.memory_space<vmem>>, %arg5: memref<1x128xf32, #tpu.memory_space<vmem>>, %arg6: memref<32x64xf32, #tpu.memory_space<vmem>>, %arg7: memref<16x64xf32, #tpu.memory_space<vmem>>, %arg8: memref<1x64xf32, #tpu.memory_space<vmem>>, %arg9: memref<32x64xf32, #tpu.memory_space<vmem>>, %arg10: memref<1x64xf32, #tpu.memory_space<vmem>>, %arg11: memref<16x1xf32, #tpu.memory_space<vmem>>, %arg12: memref<16x1xf32, #tpu.memory_space<vmem>>, %arg13: memref<1x1xf32, #tpu.memory_space<vmem>>, %arg14: memref<16x128xf32, #tpu.memory_space<vmem>>, %arg15: memref<16x128xf32, #tpu.memory_space<vmem>>, %arg16: memref<1x128xf32, #tpu.memory_space<vmem>>, %arg17: memref<8x1xf32, #tpu.memory_space<vmem>>, %arg18: memref<8x128xf32, #tpu.memory_space<vmem>>, %arg19: memref<64x32xf32, #tpu.memory_space<vmem>>, %arg20: memref<64x64xf32, #tpu.memory_space<vmem>>) attributes {dimension_semantics = [#tpu.dimension_semantics<parallel>], iteration_bounds = array<i64: 1>, scalar_prefetch = 0 : i64, scratch_operands = 2 : i64, tpu.core_type = #tpu.core_type<tc>, window_params = [{transform_indices = @transform_0, window_bounds = array<i64: 8, 8, 1>}, {pipeline_mode = #tpu.pipeline_mode<synchronous>, transform_indices = @transform_1, window_bounds = array<i64: 32, 128>}, {pipeline_mode = #tpu.pipeline_mode<synchronous>, transform_indices = @transform_2, window_bounds = array<i64: 1, 128>}, {pipeline_mode = #tpu.pipeline_mode<synchronous>, transform_indices = @transform_3, window_bounds = array<i64: 1, 128>}, {pipeline_mode = #tpu.pipeline_mode<synchronous>, transform_indices = @transform_4, window_bounds = array<i64: 1, 128>}, {pipeline_mode = #tpu.pipeline_mode<synchronous>, transform_indices = @transform_5, window_bounds = array<i64: 32, 64>}, {pipeline_mode = #tpu.pipeline_mode<synchronous>, transform_indices = @transform_6, window_bounds = array<i64: 16, 64>}, {pipeline_mode = #tpu.pipeline_mode<synchronous>, transform_indices = @transform_7, window_bounds = array<i64: 1, 64>}, {pipeline_mode = #tpu.pipeline_mode<synchronous>, transform_indices = @transform_8, window_bounds = array<i64: 32, 64>}, {pipeline_mode = #tpu.pipeline_mode<synchronous>, transform_indices = @transform_9, window_bounds = array<i64: 1, 64>}, {pipeline_mode = #tpu.pipeline_mode<synchronous>, transform_indices = @transform_10, window_bounds = array<i64: 16, 1>}, {pipeline_mode = #tpu.pipeline_mode<synchronous>, transform_indices = @transform_11, window_bounds = array<i64: 16, 1>}, {pipeline_mode = #tpu.pipeline_mode<synchronous>, transform_indices = @transform_12, window_bounds = array<i64: 1, 1>}, {pipeline_mode = #tpu.pipeline_mode<synchronous>, transform_indices = @transform_13, window_bounds = array<i64: 16, 128>}, {pipeline_mode = #tpu.pipeline_mode<synchronous>, transform_indices = @transform_14, window_bounds = array<i64: 16, 128>}, {pipeline_mode = #tpu.pipeline_mode<synchronous>, transform_indices = @transform_15, window_bounds = array<i64: 1, 128>}, {transform_indices = @transform_16, window_bounds = array<i64: 8, 1>}, {transform_indices = @transform_17, window_bounds = array<i64: 8, 128>}]} {
    %c0 = arith.constant 0 : index
    %c0_0 = arith.constant 0 : index
    %0 = vector.load %arg3[%c0, %c0_0] : memref<1x128xf32, #tpu.memory_space<vmem>>, vector<1x128xf32>
    %c0_1 = arith.constant 0 : index
    %c0_2 = arith.constant 0 : index
    %1 = vector.load %arg4[%c0_1, %c0_2] : memref<1x128xf32, #tpu.memory_space<vmem>>, vector<1x128xf32>
    %c0_3 = arith.constant 0 : index
    %c0_4 = arith.constant 0 : index
    %2 = vector.load %arg5[%c0_3, %c0_4] : memref<1x128xf32, #tpu.memory_space<vmem>>, vector<1x128xf32>
    %3 = vector.shape_cast %2 : vector<1x128xf32> to vector<1x128xf32>
    %4 = vector.broadcast %3 : vector<1x128xf32> to vector<8x128xf32>
    %5 = tpu.iota {dimensions = array<i32: 1>} : vector<8x32xi32>
    %c16_i32 = arith.constant 16 : i32
    %6 = vector.broadcast %c16_i32 : i32 to vector<8x32xi32>
    %7 = arith.cmpi slt, %5, %6 : vector<8x32xi32>
    %c16_i32_5 = arith.constant 16 : i32
    %8 = vector.broadcast %c16_i32_5 : i32 to vector<8x32xi32>
    %9 = arith.cmpi sge, %5, %8 : vector<8x32xi32>
    %cst = arith.constant 0.000000e+00 : f32
    %10 = vector.broadcast %cst : f32 to vector<8x32xf32>
    %c0_i32 = arith.constant 0 : i32
    %11 = arith.index_cast %c0_i32 : i32 to index
    %c0_6 = arith.constant 0 : index
    %c0_7 = arith.constant 0 : index
    %12 = vector.load %arg1[%11, %c0_6, %c0_7] : memref<8x8x1xf32, #tpu.memory_space<vmem>>, vector<1x8x1xf32>
    %13 = vector.shape_cast %12 : vector<1x8x1xf32> to vector<8x1xf32>
    %c7_i32 = arith.constant 7 : i32
    %14 = arith.subi %c7_i32, %c0_i32 : i32
    %15 = arith.index_cast %14 : i32 to index
    %c0_8 = arith.constant 0 : index
    %c0_9 = arith.constant 0 : index
    %16 = vector.load %arg1[%15, %c0_8, %c0_9] : memref<8x8x1xf32, #tpu.memory_space<vmem>>, vector<1x8x1xf32>
    %17 = vector.shape_cast %16 : vector<1x8x1xf32> to vector<8x1xf32>
    %c0_10 = arith.constant 0 : index
    %c0_11 = arith.constant 0 : index
    %18 = vector.load %arg2[%c0_10, %c0_11] : memref<32x128xf32, #tpu.memory_space<vmem>>, vector<32x128xf32>
    %cst_12 = arith.constant dense<0.000000e+00> : vector<8x128xf32>
    %19 = tpu.matmul %10, %18, %cst_12 {dimension_numbers = #tpu.dot_dimension_numbers<[1], [0], [0], [1], [0, 0, 1, 1], [], []>} : vector<8x32xf32>, vector<32x128xf32>, vector<8x128xf32> -> vector<8x128xf32>
    %20 = vector.broadcast %13 : vector<8x1xf32> to vector<8x128xf32>
    %21 = vector.broadcast %0 : vector<1x128xf32> to vector<8x128xf32>
    %22 = arith.mulf %20, %21 : vector<8x128xf32>
    %23 = arith.addf %19, %22 : vector<8x128xf32>
    %24 = vector.broadcast %17 : vector<8x1xf32> to vector<8x128xf32>
    %25 = vector.broadcast %1 : vector<1x128xf32> to vector<8x128xf32>
    %26 = arith.mulf %24, %25 : vector<8x128xf32>
    %27 = arith.addf %23, %26 : vector<8x128xf32>
    %28 = arith.addf %27, %4 : vector<8x128xf32>
    %29 = vector.extract_strided_slice %28 {offsets = [0, 0], sizes = [8, 96], strides = [1, 1]} : vector<8x128xf32> to vector<8x96xf32>
    %30 = arith.negf %29 : vector<8x96xf32>
    %31 = math.exp %30 : vector<8x96xf32>
    %cst_13 = arith.constant 1.000000e+00 : f32
    %32 = vector.broadcast %cst_13 : f32 to vector<8x96xf32>
    %33 = arith.addf %32, %31 : vector<8x96xf32>
    %34 = arith.divf %32, %33 : vector<8x96xf32>
    %35 = vector.extract_strided_slice %34 {offsets = [0, 0], sizes = [8, 32], strides = [1, 1]} : vector<8x96xf32> to vector<8x32xf32>
    %36 = vector.extract_strided_slice %34 {offsets = [0, 32], sizes = [8, 32], strides = [1, 1]} : vector<8x96xf32> to vector<8x32xf32>
    %37 = vector.extract_strided_slice %34 {offsets = [0, 64], sizes = [8, 32], strides = [1, 1]} : vector<8x96xf32> to vector<8x32xf32>
    %38 = vector.extract_strided_slice %28 {offsets = [0, 96], sizes = [8, 32], strides = [1, 1]} : vector<8x128xf32> to vector<8x32xf32>
    %39 = math.tanh %38 : vector<8x32xf32>
    %40 = arith.mulf %36, %10 : vector<8x32xf32>
    %41 = arith.mulf %35, %39 : vector<8x32xf32>
    %42 = arith.addf %40, %41 : vector<8x32xf32>
    %43 = math.tanh %42 : vector<8x32xf32>
    %44 = arith.mulf %37, %43 : vector<8x32xf32>
    %c8_i32 = arith.constant 8 : i32
    %45 = arith.muli %c0_i32, %c8_i32 : i32
    %46 = tpu.assume_multiple %45, 8 : i32
    %c7_i32_14 = arith.constant 7 : i32
    %47 = arith.subi %c7_i32_14, %c0_i32 : i32
    %c8_i32_15 = arith.constant 8 : i32
    %48 = arith.muli %47, %c8_i32_15 : i32
    %49 = tpu.assume_multiple %48, 8 : i32
    %50 = arith.index_cast %46 : i32 to index
    %c0_16 = arith.constant 0 : index
    %51 = vector.load %arg19[%50, %c0_16] : memref<64x32xf32, #tpu.memory_space<vmem>>, vector<8x32xf32>
    tpu.vector_store %arg19[%50, %c0_16], %44 masked %7 {strides = array<i32>} : memref<64x32xf32, #tpu.memory_space<vmem>>, vector<8x32xf32>, vector<8x32xi1>
    %52 = arith.index_cast %49 : i32 to index
    %c0_17 = arith.constant 0 : index
    %53 = vector.load %arg19[%52, %c0_17] : memref<64x32xf32, #tpu.memory_space<vmem>>, vector<8x32xf32>
    tpu.vector_store %arg19[%52, %c0_17], %44 masked %9 {strides = array<i32>} : memref<64x32xf32, #tpu.memory_space<vmem>>, vector<8x32xf32>, vector<8x32xi1>
    %c1_i32 = arith.constant 1 : i32
    %54 = arith.index_cast %c1_i32 : i32 to index
    %c0_18 = arith.constant 0 : index
    %c0_19 = arith.constant 0 : index
    %55 = vector.load %arg1[%54, %c0_18, %c0_19] : memref<8x8x1xf32, #tpu.memory_space<vmem>>, vector<1x8x1xf32>
    %56 = vector.shape_cast %55 : vector<1x8x1xf32> to vector<8x1xf32>
    %c7_i32_20 = arith.constant 7 : i32
    %57 = arith.subi %c7_i32_20, %c1_i32 : i32
    %58 = arith.index_cast %57 : i32 to index
    %c0_21 = arith.constant 0 : index
    %c0_22 = arith.constant 0 : index
    %59 = vector.load %arg1[%58, %c0_21, %c0_22] : memref<8x8x1xf32, #tpu.memory_space<vmem>>, vector<1x8x1xf32>
    %60 = vector.shape_cast %59 : vector<1x8x1xf32> to vector<8x1xf32>
    %c0_23 = arith.constant 0 : index
    %c0_24 = arith.constant 0 : index
    %61 = vector.load %arg2[%c0_23, %c0_24] : memref<32x128xf32, #tpu.memory_space<vmem>>, vector<32x128xf32>
    %cst_25 = arith.constant dense<0.000000e+00> : vector<8x128xf32>
    %62 = tpu.matmul %44, %61, %cst_25 {dimension_numbers = #tpu.dot_dimension_numbers<[1], [0], [0], [1], [0, 0, 1, 1], [], []>} : vector<8x32xf32>, vector<32x128xf32>, vector<8x128xf32> -> vector<8x128xf32>
    %63 = vector.broadcast %56 : vector<8x1xf32> to vector<8x128xf32>
    %64 = vector.broadcast %0 : vector<1x128xf32> to vector<8x128xf32>
    %65 = arith.mulf %63, %64 : vector<8x128xf32>
    %66 = arith.addf %62, %65 : vector<8x128xf32>
    %67 = vector.broadcast %60 : vector<8x1xf32> to vector<8x128xf32>
    %68 = vector.broadcast %1 : vector<1x128xf32> to vector<8x128xf32>
    %69 = arith.mulf %67, %68 : vector<8x128xf32>
    %70 = arith.addf %66, %69 : vector<8x128xf32>
    %71 = arith.addf %70, %4 : vector<8x128xf32>
    %72 = vector.extract_strided_slice %71 {offsets = [0, 0], sizes = [8, 96], strides = [1, 1]} : vector<8x128xf32> to vector<8x96xf32>
    %73 = arith.negf %72 : vector<8x96xf32>
    %74 = math.exp %73 : vector<8x96xf32>
    %cst_26 = arith.constant 1.000000e+00 : f32
    %75 = vector.broadcast %cst_26 : f32 to vector<8x96xf32>
    %76 = arith.addf %75, %74 : vector<8x96xf32>
    %77 = arith.divf %75, %76 : vector<8x96xf32>
    %78 = vector.extract_strided_slice %77 {offsets = [0, 0], sizes = [8, 32], strides = [1, 1]} : vector<8x96xf32> to vector<8x32xf32>
    %79 = vector.extract_strided_slice %77 {offsets = [0, 32], sizes = [8, 32], strides = [1, 1]} : vector<8x96xf32> to vector<8x32xf32>
    %80 = vector.extract_strided_slice %77 {offsets = [0, 64], sizes = [8, 32], strides = [1, 1]} : vector<8x96xf32> to vector<8x32xf32>
    %81 = vector.extract_strided_slice %71 {offsets = [0, 96], sizes = [8, 32], strides = [1, 1]} : vector<8x128xf32> to vector<8x32xf32>
    %82 = math.tanh %81 : vector<8x32xf32>
    %83 = arith.mulf %79, %42 : vector<8x32xf32>
    %84 = arith.mulf %78, %82 : vector<8x32xf32>
    %85 = arith.addf %83, %84 : vector<8x32xf32>
    %86 = math.tanh %85 : vector<8x32xf32>
    %87 = arith.mulf %80, %86 : vector<8x32xf32>
    %c8_i32_27 = arith.constant 8 : i32
    %88 = arith.muli %c1_i32, %c8_i32_27 : i32
    %89 = tpu.assume_multiple %88, 8 : i32
    %c7_i32_28 = arith.constant 7 : i32
    %90 = arith.subi %c7_i32_28, %c1_i32 : i32
    %c8_i32_29 = arith.constant 8 : i32
    %91 = arith.muli %90, %c8_i32_29 : i32
    %92 = tpu.assume_multiple %91, 8 : i32
    %93 = arith.index_cast %89 : i32 to index
    %c0_30 = arith.constant 0 : index
    %94 = vector.load %arg19[%93, %c0_30] : memref<64x32xf32, #tpu.memory_space<vmem>>, vector<8x32xf32>
    tpu.vector_store %arg19[%93, %c0_30], %87 masked %7 {strides = array<i32>} : memref<64x32xf32, #tpu.memory_space<vmem>>, vector<8x32xf32>, vector<8x32xi1>
    %95 = arith.index_cast %92 : i32 to index
    %c0_31 = arith.constant 0 : index
    %96 = vector.load %arg19[%95, %c0_31] : memref<64x32xf32, #tpu.memory_space<vmem>>, vector<8x32xf32>
    tpu.vector_store %arg19[%95, %c0_31], %87 masked %9 {strides = array<i32>} : memref<64x32xf32, #tpu.memory_space<vmem>>, vector<8x32xf32>, vector<8x32xi1>
    %c2_i32 = arith.constant 2 : i32
    %97 = arith.index_cast %c2_i32 : i32 to index
    %c0_32 = arith.constant 0 : index
    %c0_33 = arith.constant 0 : index
    %98 = vector.load %arg1[%97, %c0_32, %c0_33] : memref<8x8x1xf32, #tpu.memory_space<vmem>>, vector<1x8x1xf32>
    %99 = vector.shape_cast %98 : vector<1x8x1xf32> to vector<8x1xf32>
    %c7_i32_34 = arith.constant 7 : i32
    %100 = arith.subi %c7_i32_34, %c2_i32 : i32
    %101 = arith.index_cast %100 : i32 to index
    %c0_35 = arith.constant 0 : index
    %c0_36 = arith.constant 0 : index
    %102 = vector.load %arg1[%101, %c0_35, %c0_36] : memref<8x8x1xf32, #tpu.memory_space<vmem>>, vector<1x8x1xf32>
    %103 = vector.shape_cast %102 : vector<1x8x1xf32> to vector<8x1xf32>
    %c0_37 = arith.constant 0 : index
    %c0_38 = arith.constant 0 : index
    %104 = vector.load %arg2[%c0_37, %c0_38] : memref<32x128xf32, #tpu.memory_space<vmem>>, vector<32x128xf32>
    %cst_39 = arith.constant dense<0.000000e+00> : vector<8x128xf32>
    %105 = tpu.matmul %87, %104, %cst_39 {dimension_numbers = #tpu.dot_dimension_numbers<[1], [0], [0], [1], [0, 0, 1, 1], [], []>} : vector<8x32xf32>, vector<32x128xf32>, vector<8x128xf32> -> vector<8x128xf32>
    %106 = vector.broadcast %99 : vector<8x1xf32> to vector<8x128xf32>
    %107 = vector.broadcast %0 : vector<1x128xf32> to vector<8x128xf32>
    %108 = arith.mulf %106, %107 : vector<8x128xf32>
    %109 = arith.addf %105, %108 : vector<8x128xf32>
    %110 = vector.broadcast %103 : vector<8x1xf32> to vector<8x128xf32>
    %111 = vector.broadcast %1 : vector<1x128xf32> to vector<8x128xf32>
    %112 = arith.mulf %110, %111 : vector<8x128xf32>
    %113 = arith.addf %109, %112 : vector<8x128xf32>
    %114 = arith.addf %113, %4 : vector<8x128xf32>
    %115 = vector.extract_strided_slice %114 {offsets = [0, 0], sizes = [8, 96], strides = [1, 1]} : vector<8x128xf32> to vector<8x96xf32>
    %116 = arith.negf %115 : vector<8x96xf32>
    %117 = math.exp %116 : vector<8x96xf32>
    %cst_40 = arith.constant 1.000000e+00 : f32
    %118 = vector.broadcast %cst_40 : f32 to vector<8x96xf32>
    %119 = arith.addf %118, %117 : vector<8x96xf32>
    %120 = arith.divf %118, %119 : vector<8x96xf32>
    %121 = vector.extract_strided_slice %120 {offsets = [0, 0], sizes = [8, 32], strides = [1, 1]} : vector<8x96xf32> to vector<8x32xf32>
    %122 = vector.extract_strided_slice %120 {offsets = [0, 32], sizes = [8, 32], strides = [1, 1]} : vector<8x96xf32> to vector<8x32xf32>
    %123 = vector.extract_strided_slice %120 {offsets = [0, 64], sizes = [8, 32], strides = [1, 1]} : vector<8x96xf32> to vector<8x32xf32>
    %124 = vector.extract_strided_slice %114 {offsets = [0, 96], sizes = [8, 32], strides = [1, 1]} : vector<8x128xf32> to vector<8x32xf32>
    %125 = math.tanh %124 : vector<8x32xf32>
    %126 = arith.mulf %122, %85 : vector<8x32xf32>
    %127 = arith.mulf %121, %125 : vector<8x32xf32>
    %128 = arith.addf %126, %127 : vector<8x32xf32>
    %129 = math.tanh %128 : vector<8x32xf32>
    %130 = arith.mulf %123, %129 : vector<8x32xf32>
    %c8_i32_41 = arith.constant 8 : i32
    %131 = arith.muli %c2_i32, %c8_i32_41 : i32
    %132 = tpu.assume_multiple %131, 8 : i32
    %c7_i32_42 = arith.constant 7 : i32
    %133 = arith.subi %c7_i32_42, %c2_i32 : i32
    %c8_i32_43 = arith.constant 8 : i32
    %134 = arith.muli %133, %c8_i32_43 : i32
    %135 = tpu.assume_multiple %134, 8 : i32
    %136 = arith.index_cast %132 : i32 to index
    %c0_44 = arith.constant 0 : index
    %137 = vector.load %arg19[%136, %c0_44] : memref<64x32xf32, #tpu.memory_space<vmem>>, vector<8x32xf32>
    tpu.vector_store %arg19[%136, %c0_44], %130 masked %7 {strides = array<i32>} : memref<64x32xf32, #tpu.memory_space<vmem>>, vector<8x32xf32>, vector<8x32xi1>
    %138 = arith.index_cast %135 : i32 to index
    %c0_45 = arith.constant 0 : index
    %139 = vector.load %arg19[%138, %c0_45] : memref<64x32xf32, #tpu.memory_space<vmem>>, vector<8x32xf32>
    tpu.vector_store %arg19[%138, %c0_45], %130 masked %9 {strides = array<i32>} : memref<64x32xf32, #tpu.memory_space<vmem>>, vector<8x32xf32>, vector<8x32xi1>
    %c3_i32 = arith.constant 3 : i32
    %140 = arith.index_cast %c3_i32 : i32 to index
    %c0_46 = arith.constant 0 : index
    %c0_47 = arith.constant 0 : index
    %141 = vector.load %arg1[%140, %c0_46, %c0_47] : memref<8x8x1xf32, #tpu.memory_space<vmem>>, vector<1x8x1xf32>
    %142 = vector.shape_cast %141 : vector<1x8x1xf32> to vector<8x1xf32>
    %c7_i32_48 = arith.constant 7 : i32
    %143 = arith.subi %c7_i32_48, %c3_i32 : i32
    %144 = arith.index_cast %143 : i32 to index
    %c0_49 = arith.constant 0 : index
    %c0_50 = arith.constant 0 : index
    %145 = vector.load %arg1[%144, %c0_49, %c0_50] : memref<8x8x1xf32, #tpu.memory_space<vmem>>, vector<1x8x1xf32>
    %146 = vector.shape_cast %145 : vector<1x8x1xf32> to vector<8x1xf32>
    %c0_51 = arith.constant 0 : index
    %c0_52 = arith.constant 0 : index
    %147 = vector.load %arg2[%c0_51, %c0_52] : memref<32x128xf32, #tpu.memory_space<vmem>>, vector<32x128xf32>
    %cst_53 = arith.constant dense<0.000000e+00> : vector<8x128xf32>
    %148 = tpu.matmul %130, %147, %cst_53 {dimension_numbers = #tpu.dot_dimension_numbers<[1], [0], [0], [1], [0, 0, 1, 1], [], []>} : vector<8x32xf32>, vector<32x128xf32>, vector<8x128xf32> -> vector<8x128xf32>
    %149 = vector.broadcast %142 : vector<8x1xf32> to vector<8x128xf32>
    %150 = vector.broadcast %0 : vector<1x128xf32> to vector<8x128xf32>
    %151 = arith.mulf %149, %150 : vector<8x128xf32>
    %152 = arith.addf %148, %151 : vector<8x128xf32>
    %153 = vector.broadcast %146 : vector<8x1xf32> to vector<8x128xf32>
    %154 = vector.broadcast %1 : vector<1x128xf32> to vector<8x128xf32>
    %155 = arith.mulf %153, %154 : vector<8x128xf32>
    %156 = arith.addf %152, %155 : vector<8x128xf32>
    %157 = arith.addf %156, %4 : vector<8x128xf32>
    %158 = vector.extract_strided_slice %157 {offsets = [0, 0], sizes = [8, 96], strides = [1, 1]} : vector<8x128xf32> to vector<8x96xf32>
    %159 = arith.negf %158 : vector<8x96xf32>
    %160 = math.exp %159 : vector<8x96xf32>
    %cst_54 = arith.constant 1.000000e+00 : f32
    %161 = vector.broadcast %cst_54 : f32 to vector<8x96xf32>
    %162 = arith.addf %161, %160 : vector<8x96xf32>
    %163 = arith.divf %161, %162 : vector<8x96xf32>
    %164 = vector.extract_strided_slice %163 {offsets = [0, 0], sizes = [8, 32], strides = [1, 1]} : vector<8x96xf32> to vector<8x32xf32>
    %165 = vector.extract_strided_slice %163 {offsets = [0, 32], sizes = [8, 32], strides = [1, 1]} : vector<8x96xf32> to vector<8x32xf32>
    %166 = vector.extract_strided_slice %163 {offsets = [0, 64], sizes = [8, 32], strides = [1, 1]} : vector<8x96xf32> to vector<8x32xf32>
    %167 = vector.extract_strided_slice %157 {offsets = [0, 96], sizes = [8, 32], strides = [1, 1]} : vector<8x128xf32> to vector<8x32xf32>
    %168 = math.tanh %167 : vector<8x32xf32>
    %169 = arith.mulf %165, %128 : vector<8x32xf32>
    %170 = arith.mulf %164, %168 : vector<8x32xf32>
    %171 = arith.addf %169, %170 : vector<8x32xf32>
    %172 = math.tanh %171 : vector<8x32xf32>
    %173 = arith.mulf %166, %172 : vector<8x32xf32>
    %c8_i32_55 = arith.constant 8 : i32
    %174 = arith.muli %c3_i32, %c8_i32_55 : i32
    %175 = tpu.assume_multiple %174, 8 : i32
    %c7_i32_56 = arith.constant 7 : i32
    %176 = arith.subi %c7_i32_56, %c3_i32 : i32
    %c8_i32_57 = arith.constant 8 : i32
    %177 = arith.muli %176, %c8_i32_57 : i32
    %178 = tpu.assume_multiple %177, 8 : i32
    %179 = arith.index_cast %175 : i32 to index
    %c0_58 = arith.constant 0 : index
    %180 = vector.load %arg19[%179, %c0_58] : memref<64x32xf32, #tpu.memory_space<vmem>>, vector<8x32xf32>
    tpu.vector_store %arg19[%179, %c0_58], %173 masked %7 {strides = array<i32>} : memref<64x32xf32, #tpu.memory_space<vmem>>, vector<8x32xf32>, vector<8x32xi1>
    %181 = arith.index_cast %178 : i32 to index
    %c0_59 = arith.constant 0 : index
    %182 = vector.load %arg19[%181, %c0_59] : memref<64x32xf32, #tpu.memory_space<vmem>>, vector<8x32xf32>
    tpu.vector_store %arg19[%181, %c0_59], %173 masked %9 {strides = array<i32>} : memref<64x32xf32, #tpu.memory_space<vmem>>, vector<8x32xf32>, vector<8x32xi1>
    %c4_i32 = arith.constant 4 : i32
    %183 = arith.index_cast %c4_i32 : i32 to index
    %c0_60 = arith.constant 0 : index
    %c0_61 = arith.constant 0 : index
    %184 = vector.load %arg1[%183, %c0_60, %c0_61] : memref<8x8x1xf32, #tpu.memory_space<vmem>>, vector<1x8x1xf32>
    %185 = vector.shape_cast %184 : vector<1x8x1xf32> to vector<8x1xf32>
    %c7_i32_62 = arith.constant 7 : i32
    %186 = arith.subi %c7_i32_62, %c4_i32 : i32
    %187 = arith.index_cast %186 : i32 to index
    %c0_63 = arith.constant 0 : index
    %c0_64 = arith.constant 0 : index
    %188 = vector.load %arg1[%187, %c0_63, %c0_64] : memref<8x8x1xf32, #tpu.memory_space<vmem>>, vector<1x8x1xf32>
    %189 = vector.shape_cast %188 : vector<1x8x1xf32> to vector<8x1xf32>
    %c0_65 = arith.constant 0 : index
    %c0_66 = arith.constant 0 : index
    %190 = vector.load %arg2[%c0_65, %c0_66] : memref<32x128xf32, #tpu.memory_space<vmem>>, vector<32x128xf32>
    %cst_67 = arith.constant dense<0.000000e+00> : vector<8x128xf32>
    %191 = tpu.matmul %173, %190, %cst_67 {dimension_numbers = #tpu.dot_dimension_numbers<[1], [0], [0], [1], [0, 0, 1, 1], [], []>} : vector<8x32xf32>, vector<32x128xf32>, vector<8x128xf32> -> vector<8x128xf32>
    %192 = vector.broadcast %185 : vector<8x1xf32> to vector<8x128xf32>
    %193 = vector.broadcast %0 : vector<1x128xf32> to vector<8x128xf32>
    %194 = arith.mulf %192, %193 : vector<8x128xf32>
    %195 = arith.addf %191, %194 : vector<8x128xf32>
    %196 = vector.broadcast %189 : vector<8x1xf32> to vector<8x128xf32>
    %197 = vector.broadcast %1 : vector<1x128xf32> to vector<8x128xf32>
    %198 = arith.mulf %196, %197 : vector<8x128xf32>
    %199 = arith.addf %195, %198 : vector<8x128xf32>
    %200 = arith.addf %199, %4 : vector<8x128xf32>
    %201 = vector.extract_strided_slice %200 {offsets = [0, 0], sizes = [8, 96], strides = [1, 1]} : vector<8x128xf32> to vector<8x96xf32>
    %202 = arith.negf %201 : vector<8x96xf32>
    %203 = math.exp %202 : vector<8x96xf32>
    %cst_68 = arith.constant 1.000000e+00 : f32
    %204 = vector.broadcast %cst_68 : f32 to vector<8x96xf32>
    %205 = arith.addf %204, %203 : vector<8x96xf32>
    %206 = arith.divf %204, %205 : vector<8x96xf32>
    %207 = vector.extract_strided_slice %206 {offsets = [0, 0], sizes = [8, 32], strides = [1, 1]} : vector<8x96xf32> to vector<8x32xf32>
    %208 = vector.extract_strided_slice %206 {offsets = [0, 32], sizes = [8, 32], strides = [1, 1]} : vector<8x96xf32> to vector<8x32xf32>
    %209 = vector.extract_strided_slice %206 {offsets = [0, 64], sizes = [8, 32], strides = [1, 1]} : vector<8x96xf32> to vector<8x32xf32>
    %210 = vector.extract_strided_slice %200 {offsets = [0, 96], sizes = [8, 32], strides = [1, 1]} : vector<8x128xf32> to vector<8x32xf32>
    %211 = math.tanh %210 : vector<8x32xf32>
    %212 = arith.mulf %208, %171 : vector<8x32xf32>
    %213 = arith.mulf %207, %211 : vector<8x32xf32>
    %214 = arith.addf %212, %213 : vector<8x32xf32>
    %215 = math.tanh %214 : vector<8x32xf32>
    %216 = arith.mulf %209, %215 : vector<8x32xf32>
    %c8_i32_69 = arith.constant 8 : i32
    %217 = arith.muli %c4_i32, %c8_i32_69 : i32
    %218 = tpu.assume_multiple %217, 8 : i32
    %c7_i32_70 = arith.constant 7 : i32
    %219 = arith.subi %c7_i32_70, %c4_i32 : i32
    %c8_i32_71 = arith.constant 8 : i32
    %220 = arith.muli %219, %c8_i32_71 : i32
    %221 = tpu.assume_multiple %220, 8 : i32
    %222 = arith.index_cast %218 : i32 to index
    %c0_72 = arith.constant 0 : index
    %223 = vector.load %arg19[%222, %c0_72] : memref<64x32xf32, #tpu.memory_space<vmem>>, vector<8x32xf32>
    tpu.vector_store %arg19[%222, %c0_72], %216 masked %7 {strides = array<i32>} : memref<64x32xf32, #tpu.memory_space<vmem>>, vector<8x32xf32>, vector<8x32xi1>
    %224 = arith.index_cast %221 : i32 to index
    %c0_73 = arith.constant 0 : index
    %225 = vector.load %arg19[%224, %c0_73] : memref<64x32xf32, #tpu.memory_space<vmem>>, vector<8x32xf32>
    tpu.vector_store %arg19[%224, %c0_73], %216 masked %9 {strides = array<i32>} : memref<64x32xf32, #tpu.memory_space<vmem>>, vector<8x32xf32>, vector<8x32xi1>
    %c5_i32 = arith.constant 5 : i32
    %226 = arith.index_cast %c5_i32 : i32 to index
    %c0_74 = arith.constant 0 : index
    %c0_75 = arith.constant 0 : index
    %227 = vector.load %arg1[%226, %c0_74, %c0_75] : memref<8x8x1xf32, #tpu.memory_space<vmem>>, vector<1x8x1xf32>
    %228 = vector.shape_cast %227 : vector<1x8x1xf32> to vector<8x1xf32>
    %c7_i32_76 = arith.constant 7 : i32
    %229 = arith.subi %c7_i32_76, %c5_i32 : i32
    %230 = arith.index_cast %229 : i32 to index
    %c0_77 = arith.constant 0 : index
    %c0_78 = arith.constant 0 : index
    %231 = vector.load %arg1[%230, %c0_77, %c0_78] : memref<8x8x1xf32, #tpu.memory_space<vmem>>, vector<1x8x1xf32>
    %232 = vector.shape_cast %231 : vector<1x8x1xf32> to vector<8x1xf32>
    %c0_79 = arith.constant 0 : index
    %c0_80 = arith.constant 0 : index
    %233 = vector.load %arg2[%c0_79, %c0_80] : memref<32x128xf32, #tpu.memory_space<vmem>>, vector<32x128xf32>
    %cst_81 = arith.constant dense<0.000000e+00> : vector<8x128xf32>
    %234 = tpu.matmul %216, %233, %cst_81 {dimension_numbers = #tpu.dot_dimension_numbers<[1], [0], [0], [1], [0, 0, 1, 1], [], []>} : vector<8x32xf32>, vector<32x128xf32>, vector<8x128xf32> -> vector<8x128xf32>
    %235 = vector.broadcast %228 : vector<8x1xf32> to vector<8x128xf32>
    %236 = vector.broadcast %0 : vector<1x128xf32> to vector<8x128xf32>
    %237 = arith.mulf %235, %236 : vector<8x128xf32>
    %238 = arith.addf %234, %237 : vector<8x128xf32>
    %239 = vector.broadcast %232 : vector<8x1xf32> to vector<8x128xf32>
    %240 = vector.broadcast %1 : vector<1x128xf32> to vector<8x128xf32>
    %241 = arith.mulf %239, %240 : vector<8x128xf32>
    %242 = arith.addf %238, %241 : vector<8x128xf32>
    %243 = arith.addf %242, %4 : vector<8x128xf32>
    %244 = vector.extract_strided_slice %243 {offsets = [0, 0], sizes = [8, 96], strides = [1, 1]} : vector<8x128xf32> to vector<8x96xf32>
    %245 = arith.negf %244 : vector<8x96xf32>
    %246 = math.exp %245 : vector<8x96xf32>
    %cst_82 = arith.constant 1.000000e+00 : f32
    %247 = vector.broadcast %cst_82 : f32 to vector<8x96xf32>
    %248 = arith.addf %247, %246 : vector<8x96xf32>
    %249 = arith.divf %247, %248 : vector<8x96xf32>
    %250 = vector.extract_strided_slice %249 {offsets = [0, 0], sizes = [8, 32], strides = [1, 1]} : vector<8x96xf32> to vector<8x32xf32>
    %251 = vector.extract_strided_slice %249 {offsets = [0, 32], sizes = [8, 32], strides = [1, 1]} : vector<8x96xf32> to vector<8x32xf32>
    %252 = vector.extract_strided_slice %249 {offsets = [0, 64], sizes = [8, 32], strides = [1, 1]} : vector<8x96xf32> to vector<8x32xf32>
    %253 = vector.extract_strided_slice %243 {offsets = [0, 96], sizes = [8, 32], strides = [1, 1]} : vector<8x128xf32> to vector<8x32xf32>
    %254 = math.tanh %253 : vector<8x32xf32>
    %255 = arith.mulf %251, %214 : vector<8x32xf32>
    %256 = arith.mulf %250, %254 : vector<8x32xf32>
    %257 = arith.addf %255, %256 : vector<8x32xf32>
    %258 = math.tanh %257 : vector<8x32xf32>
    %259 = arith.mulf %252, %258 : vector<8x32xf32>
    %c8_i32_83 = arith.constant 8 : i32
    %260 = arith.muli %c5_i32, %c8_i32_83 : i32
    %261 = tpu.assume_multiple %260, 8 : i32
    %c7_i32_84 = arith.constant 7 : i32
    %262 = arith.subi %c7_i32_84, %c5_i32 : i32
    %c8_i32_85 = arith.constant 8 : i32
    %263 = arith.muli %262, %c8_i32_85 : i32
    %264 = tpu.assume_multiple %263, 8 : i32
    %265 = arith.index_cast %261 : i32 to index
    %c0_86 = arith.constant 0 : index
    %266 = vector.load %arg19[%265, %c0_86] : memref<64x32xf32, #tpu.memory_space<vmem>>, vector<8x32xf32>
    tpu.vector_store %arg19[%265, %c0_86], %259 masked %7 {strides = array<i32>} : memref<64x32xf32, #tpu.memory_space<vmem>>, vector<8x32xf32>, vector<8x32xi1>
    %267 = arith.index_cast %264 : i32 to index
    %c0_87 = arith.constant 0 : index
    %268 = vector.load %arg19[%267, %c0_87] : memref<64x32xf32, #tpu.memory_space<vmem>>, vector<8x32xf32>
    tpu.vector_store %arg19[%267, %c0_87], %259 masked %9 {strides = array<i32>} : memref<64x32xf32, #tpu.memory_space<vmem>>, vector<8x32xf32>, vector<8x32xi1>
    %c6_i32 = arith.constant 6 : i32
    %269 = arith.index_cast %c6_i32 : i32 to index
    %c0_88 = arith.constant 0 : index
    %c0_89 = arith.constant 0 : index
    %270 = vector.load %arg1[%269, %c0_88, %c0_89] : memref<8x8x1xf32, #tpu.memory_space<vmem>>, vector<1x8x1xf32>
    %271 = vector.shape_cast %270 : vector<1x8x1xf32> to vector<8x1xf32>
    %c7_i32_90 = arith.constant 7 : i32
    %272 = arith.subi %c7_i32_90, %c6_i32 : i32
    %273 = arith.index_cast %272 : i32 to index
    %c0_91 = arith.constant 0 : index
    %c0_92 = arith.constant 0 : index
    %274 = vector.load %arg1[%273, %c0_91, %c0_92] : memref<8x8x1xf32, #tpu.memory_space<vmem>>, vector<1x8x1xf32>
    %275 = vector.shape_cast %274 : vector<1x8x1xf32> to vector<8x1xf32>
    %c0_93 = arith.constant 0 : index
    %c0_94 = arith.constant 0 : index
    %276 = vector.load %arg2[%c0_93, %c0_94] : memref<32x128xf32, #tpu.memory_space<vmem>>, vector<32x128xf32>
    %cst_95 = arith.constant dense<0.000000e+00> : vector<8x128xf32>
    %277 = tpu.matmul %259, %276, %cst_95 {dimension_numbers = #tpu.dot_dimension_numbers<[1], [0], [0], [1], [0, 0, 1, 1], [], []>} : vector<8x32xf32>, vector<32x128xf32>, vector<8x128xf32> -> vector<8x128xf32>
    %278 = vector.broadcast %271 : vector<8x1xf32> to vector<8x128xf32>
    %279 = vector.broadcast %0 : vector<1x128xf32> to vector<8x128xf32>
    %280 = arith.mulf %278, %279 : vector<8x128xf32>
    %281 = arith.addf %277, %280 : vector<8x128xf32>
    %282 = vector.broadcast %275 : vector<8x1xf32> to vector<8x128xf32>
    %283 = vector.broadcast %1 : vector<1x128xf32> to vector<8x128xf32>
    %284 = arith.mulf %282, %283 : vector<8x128xf32>
    %285 = arith.addf %281, %284 : vector<8x128xf32>
    %286 = arith.addf %285, %4 : vector<8x128xf32>
    %287 = vector.extract_strided_slice %286 {offsets = [0, 0], sizes = [8, 96], strides = [1, 1]} : vector<8x128xf32> to vector<8x96xf32>
    %288 = arith.negf %287 : vector<8x96xf32>
    %289 = math.exp %288 : vector<8x96xf32>
    %cst_96 = arith.constant 1.000000e+00 : f32
    %290 = vector.broadcast %cst_96 : f32 to vector<8x96xf32>
    %291 = arith.addf %290, %289 : vector<8x96xf32>
    %292 = arith.divf %290, %291 : vector<8x96xf32>
    %293 = vector.extract_strided_slice %292 {offsets = [0, 0], sizes = [8, 32], strides = [1, 1]} : vector<8x96xf32> to vector<8x32xf32>
    %294 = vector.extract_strided_slice %292 {offsets = [0, 32], sizes = [8, 32], strides = [1, 1]} : vector<8x96xf32> to vector<8x32xf32>
    %295 = vector.extract_strided_slice %292 {offsets = [0, 64], sizes = [8, 32], strides = [1, 1]} : vector<8x96xf32> to vector<8x32xf32>
    %296 = vector.extract_strided_slice %286 {offsets = [0, 96], sizes = [8, 32], strides = [1, 1]} : vector<8x128xf32> to vector<8x32xf32>
    %297 = math.tanh %296 : vector<8x32xf32>
    %298 = arith.mulf %294, %257 : vector<8x32xf32>
    %299 = arith.mulf %293, %297 : vector<8x32xf32>
    %300 = arith.addf %298, %299 : vector<8x32xf32>
    %301 = math.tanh %300 : vector<8x32xf32>
    %302 = arith.mulf %295, %301 : vector<8x32xf32>
    %c8_i32_97 = arith.constant 8 : i32
    %303 = arith.muli %c6_i32, %c8_i32_97 : i32
    %304 = tpu.assume_multiple %303, 8 : i32
    %c7_i32_98 = arith.constant 7 : i32
    %305 = arith.subi %c7_i32_98, %c6_i32 : i32
    %c8_i32_99 = arith.constant 8 : i32
    %306 = arith.muli %305, %c8_i32_99 : i32
    %307 = tpu.assume_multiple %306, 8 : i32
    %308 = arith.index_cast %304 : i32 to index
    %c0_100 = arith.constant 0 : index
    %309 = vector.load %arg19[%308, %c0_100] : memref<64x32xf32, #tpu.memory_space<vmem>>, vector<8x32xf32>
    tpu.vector_store %arg19[%308, %c0_100], %302 masked %7 {strides = array<i32>} : memref<64x32xf32, #tpu.memory_space<vmem>>, vector<8x32xf32>, vector<8x32xi1>
    %310 = arith.index_cast %307 : i32 to index
    %c0_101 = arith.constant 0 : index
    %311 = vector.load %arg19[%310, %c0_101] : memref<64x32xf32, #tpu.memory_space<vmem>>, vector<8x32xf32>
    tpu.vector_store %arg19[%310, %c0_101], %302 masked %9 {strides = array<i32>} : memref<64x32xf32, #tpu.memory_space<vmem>>, vector<8x32xf32>, vector<8x32xi1>
    %c7_i32_102 = arith.constant 7 : i32
    %312 = arith.index_cast %c7_i32_102 : i32 to index
    %c0_103 = arith.constant 0 : index
    %c0_104 = arith.constant 0 : index
    %313 = vector.load %arg1[%312, %c0_103, %c0_104] : memref<8x8x1xf32, #tpu.memory_space<vmem>>, vector<1x8x1xf32>
    %314 = vector.shape_cast %313 : vector<1x8x1xf32> to vector<8x1xf32>
    %c7_i32_105 = arith.constant 7 : i32
    %315 = arith.subi %c7_i32_105, %c7_i32_102 : i32
    %316 = arith.index_cast %315 : i32 to index
    %c0_106 = arith.constant 0 : index
    %c0_107 = arith.constant 0 : index
    %317 = vector.load %arg1[%316, %c0_106, %c0_107] : memref<8x8x1xf32, #tpu.memory_space<vmem>>, vector<1x8x1xf32>
    %318 = vector.shape_cast %317 : vector<1x8x1xf32> to vector<8x1xf32>
    %c0_108 = arith.constant 0 : index
    %c0_109 = arith.constant 0 : index
    %319 = vector.load %arg2[%c0_108, %c0_109] : memref<32x128xf32, #tpu.memory_space<vmem>>, vector<32x128xf32>
    %cst_110 = arith.constant dense<0.000000e+00> : vector<8x128xf32>
    %320 = tpu.matmul %302, %319, %cst_110 {dimension_numbers = #tpu.dot_dimension_numbers<[1], [0], [0], [1], [0, 0, 1, 1], [], []>} : vector<8x32xf32>, vector<32x128xf32>, vector<8x128xf32> -> vector<8x128xf32>
    %321 = vector.broadcast %314 : vector<8x1xf32> to vector<8x128xf32>
    %322 = vector.broadcast %0 : vector<1x128xf32> to vector<8x128xf32>
    %323 = arith.mulf %321, %322 : vector<8x128xf32>
    %324 = arith.addf %320, %323 : vector<8x128xf32>
    %325 = vector.broadcast %318 : vector<8x1xf32> to vector<8x128xf32>
    %326 = vector.broadcast %1 : vector<1x128xf32> to vector<8x128xf32>
    %327 = arith.mulf %325, %326 : vector<8x128xf32>
    %328 = arith.addf %324, %327 : vector<8x128xf32>
    %329 = arith.addf %328, %4 : vector<8x128xf32>
    %330 = vector.extract_strided_slice %329 {offsets = [0, 0], sizes = [8, 96], strides = [1, 1]} : vector<8x128xf32> to vector<8x96xf32>
    %331 = arith.negf %330 : vector<8x96xf32>
    %332 = math.exp %331 : vector<8x96xf32>
    %cst_111 = arith.constant 1.000000e+00 : f32
    %333 = vector.broadcast %cst_111 : f32 to vector<8x96xf32>
    %334 = arith.addf %333, %332 : vector<8x96xf32>
    %335 = arith.divf %333, %334 : vector<8x96xf32>
    %336 = vector.extract_strided_slice %335 {offsets = [0, 0], sizes = [8, 32], strides = [1, 1]} : vector<8x96xf32> to vector<8x32xf32>
    %337 = vector.extract_strided_slice %335 {offsets = [0, 32], sizes = [8, 32], strides = [1, 1]} : vector<8x96xf32> to vector<8x32xf32>
    %338 = vector.extract_strided_slice %335 {offsets = [0, 64], sizes = [8, 32], strides = [1, 1]} : vector<8x96xf32> to vector<8x32xf32>
    %339 = vector.extract_strided_slice %329 {offsets = [0, 96], sizes = [8, 32], strides = [1, 1]} : vector<8x128xf32> to vector<8x32xf32>
    %340 = math.tanh %339 : vector<8x32xf32>
    %341 = arith.mulf %337, %300 : vector<8x32xf32>
    %342 = arith.mulf %336, %340 : vector<8x32xf32>
    %343 = arith.addf %341, %342 : vector<8x32xf32>
    %344 = math.tanh %343 : vector<8x32xf32>
    %345 = arith.mulf %338, %344 : vector<8x32xf32>
    %c8_i32_112 = arith.constant 8 : i32
    %346 = arith.muli %c7_i32_102, %c8_i32_112 : i32
    %347 = tpu.assume_multiple %346, 8 : i32
    %c7_i32_113 = arith.constant 7 : i32
    %348 = arith.subi %c7_i32_113, %c7_i32_102 : i32
    %c8_i32_114 = arith.constant 8 : i32
    %349 = arith.muli %348, %c8_i32_114 : i32
    %350 = tpu.assume_multiple %349, 8 : i32
    %351 = arith.index_cast %347 : i32 to index
    %c0_115 = arith.constant 0 : index
    %352 = vector.load %arg19[%351, %c0_115] : memref<64x32xf32, #tpu.memory_space<vmem>>, vector<8x32xf32>
    tpu.vector_store %arg19[%351, %c0_115], %345 masked %7 {strides = array<i32>} : memref<64x32xf32, #tpu.memory_space<vmem>>, vector<8x32xf32>, vector<8x32xi1>
    %353 = arith.index_cast %350 : i32 to index
    %c0_116 = arith.constant 0 : index
    %354 = vector.load %arg19[%353, %c0_116] : memref<64x32xf32, #tpu.memory_space<vmem>>, vector<8x32xf32>
    tpu.vector_store %arg19[%353, %c0_116], %345 masked %9 {strides = array<i32>} : memref<64x32xf32, #tpu.memory_space<vmem>>, vector<8x32xf32>, vector<8x32xi1>
    %c8_i32_117 = arith.constant 8 : i32
    %c0_118 = arith.constant 0 : index
    %c0_119 = arith.constant 0 : index
    %355 = vector.load %arg8[%c0_118, %c0_119] : memref<1x64xf32, #tpu.memory_space<vmem>>, vector<1x64xf32>
    %356 = vector.shape_cast %355 : vector<1x64xf32> to vector<1x64xf32>
    %357 = vector.broadcast %356 : vector<1x64xf32> to vector<8x64xf32>
    %cst_120 = arith.constant 0.000000e+00 : f32
    %358 = vector.broadcast %cst_120 : f32 to vector<8x16xf32>
    %cst_121 = arith.constant 0.000000e+00 : f32
    %359 = vector.broadcast %cst_121 : f32 to vector<8x16xf32>
    %c0_122 = arith.constant 0 : index
    %c0_123 = arith.constant 0 : index
    %360 = vector.load %arg19[%c0_122, %c0_123] : memref<64x32xf32, #tpu.memory_space<vmem>>, vector<64x32xf32>
    %c0_124 = arith.constant 0 : index
    %c0_125 = arith.constant 0 : index
    %361 = vector.load %arg6[%c0_124, %c0_125] : memref<32x64xf32, #tpu.memory_space<vmem>>, vector<32x64xf32>
    %cst_126 = arith.constant dense<0.000000e+00> : vector<64x64xf32>
    %362 = tpu.matmul %360, %361, %cst_126 {dimension_numbers = #tpu.dot_dimension_numbers<[1], [0], [0], [1], [0, 0, 1, 1], [], []>} : vector<64x32xf32>, vector<32x64xf32>, vector<64x64xf32> -> vector<64x64xf32>
    %c0_127 = arith.constant 0 : index
    %c0_128 = arith.constant 0 : index
    %363 = vector.load %arg20[%c0_127, %c0_128] : memref<64x64xf32, #tpu.memory_space<vmem>>, vector<64x64xf32>
    tpu.vector_store %arg20[%c0_127, %c0_128], %362 {strides = array<i32>} : memref<64x64xf32, #tpu.memory_space<vmem>>, vector<64x64xf32>,
    %c0_i32_129 = arith.constant 0 : i32
    %c8_i32_130 = arith.constant 8 : i32
    %364 = arith.muli %c0_i32_129, %c8_i32_130 : i32
    %365 = tpu.assume_multiple %364, 8 : i32
    %366 = arith.index_cast %365 : i32 to index
    %c0_131 = arith.constant 0 : index
    %367 = vector.load %arg20[%366, %c0_131] : memref<64x64xf32, #tpu.memory_space<vmem>>, vector<8x64xf32>
    %368 = arith.addf %367, %357 : vector<8x64xf32>
    %c0_132 = arith.constant 0 : index
    %c0_133 = arith.constant 0 : index
    %369 = vector.load %arg7[%c0_132, %c0_133] : memref<16x64xf32, #tpu.memory_space<vmem>>, vector<16x64xf32>
    %cst_134 = arith.constant dense<0.000000e+00> : vector<8x64xf32>
    %370 = tpu.matmul %358, %369, %cst_134 {dimension_numbers = #tpu.dot_dimension_numbers<[1], [0], [0], [1], [0, 0, 1, 1], [], []>} : vector<8x16xf32>, vector<16x64xf32>, vector<8x64xf32> -> vector<8x64xf32>
    %371 = arith.addf %368, %370 : vector<8x64xf32>
    %372 = vector.extract_strided_slice %371 {offsets = [0, 0], sizes = [8, 48], strides = [1, 1]} : vector<8x64xf32> to vector<8x48xf32>
    %373 = arith.negf %372 : vector<8x48xf32>
    %374 = math.exp %373 : vector<8x48xf32>
    %cst_135 = arith.constant 1.000000e+00 : f32
    %375 = vector.broadcast %cst_135 : f32 to vector<8x48xf32>
    %376 = arith.addf %375, %374 : vector<8x48xf32>
    %377 = arith.divf %375, %376 : vector<8x48xf32>
    %378 = vector.extract_strided_slice %377 {offsets = [0, 0], sizes = [8, 16], strides = [1, 1]} : vector<8x48xf32> to vector<8x16xf32>
    %379 = vector.extract_strided_slice %377 {offsets = [0, 16], sizes = [8, 16], strides = [1, 1]} : vector<8x48xf32> to vector<8x16xf32>
    %380 = vector.extract_strided_slice %377 {offsets = [0, 32], sizes = [8, 16], strides = [1, 1]} : vector<8x48xf32> to vector<8x16xf32>
    %381 = vector.extract_strided_slice %371 {offsets = [0, 48], sizes = [8, 16], strides = [1, 1]} : vector<8x64xf32> to vector<8x16xf32>
    %382 = math.tanh %381 : vector<8x16xf32>
    %383 = arith.mulf %379, %359 : vector<8x16xf32>
    %384 = arith.mulf %378, %382 : vector<8x16xf32>
    %385 = arith.addf %383, %384 : vector<8x16xf32>
    %386 = math.tanh %385 : vector<8x16xf32>
    %387 = arith.mulf %380, %386 : vector<8x16xf32>
    %c1_i32_136 = arith.constant 1 : i32
    %c8_i32_137 = arith.constant 8 : i32
    %388 = arith.muli %c1_i32_136, %c8_i32_137 : i32
    %389 = tpu.assume_multiple %388, 8 : i32
    %390 = arith.index_cast %389 : i32 to index
    %c0_138 = arith.constant 0 : index
    %391 = vector.load %arg20[%390, %c0_138] : memref<64x64xf32, #tpu.memory_space<vmem>>, vector<8x64xf32>
    %392 = arith.addf %391, %357 : vector<8x64xf32>
    %c0_139 = arith.constant 0 : index
    %c0_140 = arith.constant 0 : index
    %393 = vector.load %arg7[%c0_139, %c0_140] : memref<16x64xf32, #tpu.memory_space<vmem>>, vector<16x64xf32>
    %cst_141 = arith.constant dense<0.000000e+00> : vector<8x64xf32>
    %394 = tpu.matmul %387, %393, %cst_141 {dimension_numbers = #tpu.dot_dimension_numbers<[1], [0], [0], [1], [0, 0, 1, 1], [], []>} : vector<8x16xf32>, vector<16x64xf32>, vector<8x64xf32> -> vector<8x64xf32>
    %395 = arith.addf %392, %394 : vector<8x64xf32>
    %396 = vector.extract_strided_slice %395 {offsets = [0, 0], sizes = [8, 48], strides = [1, 1]} : vector<8x64xf32> to vector<8x48xf32>
    %397 = arith.negf %396 : vector<8x48xf32>
    %398 = math.exp %397 : vector<8x48xf32>
    %cst_142 = arith.constant 1.000000e+00 : f32
    %399 = vector.broadcast %cst_142 : f32 to vector<8x48xf32>
    %400 = arith.addf %399, %398 : vector<8x48xf32>
    %401 = arith.divf %399, %400 : vector<8x48xf32>
    %402 = vector.extract_strided_slice %401 {offsets = [0, 0], sizes = [8, 16], strides = [1, 1]} : vector<8x48xf32> to vector<8x16xf32>
    %403 = vector.extract_strided_slice %401 {offsets = [0, 16], sizes = [8, 16], strides = [1, 1]} : vector<8x48xf32> to vector<8x16xf32>
    %404 = vector.extract_strided_slice %401 {offsets = [0, 32], sizes = [8, 16], strides = [1, 1]} : vector<8x48xf32> to vector<8x16xf32>
    %405 = vector.extract_strided_slice %395 {offsets = [0, 48], sizes = [8, 16], strides = [1, 1]} : vector<8x64xf32> to vector<8x16xf32>
    %406 = math.tanh %405 : vector<8x16xf32>
    %407 = arith.mulf %403, %385 : vector<8x16xf32>
    %408 = arith.mulf %402, %406 : vector<8x16xf32>
    %409 = arith.addf %407, %408 : vector<8x16xf32>
    %410 = math.tanh %409 : vector<8x16xf32>
    %411 = arith.mulf %404, %410 : vector<8x16xf32>
    %c2_i32_143 = arith.constant 2 : i32
    %c8_i32_144 = arith.constant 8 : i32
    %412 = arith.muli %c2_i32_143, %c8_i32_144 : i32
    %413 = tpu.assume_multiple %412, 8 : i32
    %414 = arith.index_cast %413 : i32 to index
    %c0_145 = arith.constant 0 : index
    %415 = vector.load %arg20[%414, %c0_145] : memref<64x64xf32, #tpu.memory_space<vmem>>, vector<8x64xf32>
    %416 = arith.addf %415, %357 : vector<8x64xf32>
    %c0_146 = arith.constant 0 : index
    %c0_147 = arith.constant 0 : index
    %417 = vector.load %arg7[%c0_146, %c0_147] : memref<16x64xf32, #tpu.memory_space<vmem>>, vector<16x64xf32>
    %cst_148 = arith.constant dense<0.000000e+00> : vector<8x64xf32>
    %418 = tpu.matmul %411, %417, %cst_148 {dimension_numbers = #tpu.dot_dimension_numbers<[1], [0], [0], [1], [0, 0, 1, 1], [], []>} : vector<8x16xf32>, vector<16x64xf32>, vector<8x64xf32> -> vector<8x64xf32>
    %419 = arith.addf %416, %418 : vector<8x64xf32>
    %420 = vector.extract_strided_slice %419 {offsets = [0, 0], sizes = [8, 48], strides = [1, 1]} : vector<8x64xf32> to vector<8x48xf32>
    %421 = arith.negf %420 : vector<8x48xf32>
    %422 = math.exp %421 : vector<8x48xf32>
    %cst_149 = arith.constant 1.000000e+00 : f32
    %423 = vector.broadcast %cst_149 : f32 to vector<8x48xf32>
    %424 = arith.addf %423, %422 : vector<8x48xf32>
    %425 = arith.divf %423, %424 : vector<8x48xf32>
    %426 = vector.extract_strided_slice %425 {offsets = [0, 0], sizes = [8, 16], strides = [1, 1]} : vector<8x48xf32> to vector<8x16xf32>
    %427 = vector.extract_strided_slice %425 {offsets = [0, 16], sizes = [8, 16], strides = [1, 1]} : vector<8x48xf32> to vector<8x16xf32>
    %428 = vector.extract_strided_slice %425 {offsets = [0, 32], sizes = [8, 16], strides = [1, 1]} : vector<8x48xf32> to vector<8x16xf32>
    %429 = vector.extract_strided_slice %419 {offsets = [0, 48], sizes = [8, 16], strides = [1, 1]} : vector<8x64xf32> to vector<8x16xf32>
    %430 = math.tanh %429 : vector<8x16xf32>
    %431 = arith.mulf %427, %409 : vector<8x16xf32>
    %432 = arith.mulf %426, %430 : vector<8x16xf32>
    %433 = arith.addf %431, %432 : vector<8x16xf32>
    %434 = math.tanh %433 : vector<8x16xf32>
    %435 = arith.mulf %428, %434 : vector<8x16xf32>
    %c3_i32_150 = arith.constant 3 : i32
    %c8_i32_151 = arith.constant 8 : i32
    %436 = arith.muli %c3_i32_150, %c8_i32_151 : i32
    %437 = tpu.assume_multiple %436, 8 : i32
    %438 = arith.index_cast %437 : i32 to index
    %c0_152 = arith.constant 0 : index
    %439 = vector.load %arg20[%438, %c0_152] : memref<64x64xf32, #tpu.memory_space<vmem>>, vector<8x64xf32>
    %440 = arith.addf %439, %357 : vector<8x64xf32>
    %c0_153 = arith.constant 0 : index
    %c0_154 = arith.constant 0 : index
    %441 = vector.load %arg7[%c0_153, %c0_154] : memref<16x64xf32, #tpu.memory_space<vmem>>, vector<16x64xf32>
    %cst_155 = arith.constant dense<0.000000e+00> : vector<8x64xf32>
    %442 = tpu.matmul %435, %441, %cst_155 {dimension_numbers = #tpu.dot_dimension_numbers<[1], [0], [0], [1], [0, 0, 1, 1], [], []>} : vector<8x16xf32>, vector<16x64xf32>, vector<8x64xf32> -> vector<8x64xf32>
    %443 = arith.addf %440, %442 : vector<8x64xf32>
    %444 = vector.extract_strided_slice %443 {offsets = [0, 0], sizes = [8, 48], strides = [1, 1]} : vector<8x64xf32> to vector<8x48xf32>
    %445 = arith.negf %444 : vector<8x48xf32>
    %446 = math.exp %445 : vector<8x48xf32>
    %cst_156 = arith.constant 1.000000e+00 : f32
    %447 = vector.broadcast %cst_156 : f32 to vector<8x48xf32>
    %448 = arith.addf %447, %446 : vector<8x48xf32>
    %449 = arith.divf %447, %448 : vector<8x48xf32>
    %450 = vector.extract_strided_slice %449 {offsets = [0, 0], sizes = [8, 16], strides = [1, 1]} : vector<8x48xf32> to vector<8x16xf32>
    %451 = vector.extract_strided_slice %449 {offsets = [0, 16], sizes = [8, 16], strides = [1, 1]} : vector<8x48xf32> to vector<8x16xf32>
    %452 = vector.extract_strided_slice %449 {offsets = [0, 32], sizes = [8, 16], strides = [1, 1]} : vector<8x48xf32> to vector<8x16xf32>
    %453 = vector.extract_strided_slice %443 {offsets = [0, 48], sizes = [8, 16], strides = [1, 1]} : vector<8x64xf32> to vector<8x16xf32>
    %454 = math.tanh %453 : vector<8x16xf32>
    %455 = arith.mulf %451, %433 : vector<8x16xf32>
    %456 = arith.mulf %450, %454 : vector<8x16xf32>
    %457 = arith.addf %455, %456 : vector<8x16xf32>
    %458 = math.tanh %457 : vector<8x16xf32>
    %459 = arith.mulf %452, %458 : vector<8x16xf32>
    %c4_i32_157 = arith.constant 4 : i32
    %c8_i32_158 = arith.constant 8 : i32
    %460 = arith.muli %c4_i32_157, %c8_i32_158 : i32
    %461 = tpu.assume_multiple %460, 8 : i32
    %462 = arith.index_cast %461 : i32 to index
    %c0_159 = arith.constant 0 : index
    %463 = vector.load %arg20[%462, %c0_159] : memref<64x64xf32, #tpu.memory_space<vmem>>, vector<8x64xf32>
    %464 = arith.addf %463, %357 : vector<8x64xf32>
    %c0_160 = arith.constant 0 : index
    %c0_161 = arith.constant 0 : index
    %465 = vector.load %arg7[%c0_160, %c0_161] : memref<16x64xf32, #tpu.memory_space<vmem>>, vector<16x64xf32>
    %cst_162 = arith.constant dense<0.000000e+00> : vector<8x64xf32>
    %466 = tpu.matmul %459, %465, %cst_162 {dimension_numbers = #tpu.dot_dimension_numbers<[1], [0], [0], [1], [0, 0, 1, 1], [], []>} : vector<8x16xf32>, vector<16x64xf32>, vector<8x64xf32> -> vector<8x64xf32>
    %467 = arith.addf %464, %466 : vector<8x64xf32>
    %468 = vector.extract_strided_slice %467 {offsets = [0, 0], sizes = [8, 48], strides = [1, 1]} : vector<8x64xf32> to vector<8x48xf32>
    %469 = arith.negf %468 : vector<8x48xf32>
    %470 = math.exp %469 : vector<8x48xf32>
    %cst_163 = arith.constant 1.000000e+00 : f32
    %471 = vector.broadcast %cst_163 : f32 to vector<8x48xf32>
    %472 = arith.addf %471, %470 : vector<8x48xf32>
    %473 = arith.divf %471, %472 : vector<8x48xf32>
    %474 = vector.extract_strided_slice %473 {offsets = [0, 0], sizes = [8, 16], strides = [1, 1]} : vector<8x48xf32> to vector<8x16xf32>
    %475 = vector.extract_strided_slice %473 {offsets = [0, 16], sizes = [8, 16], strides = [1, 1]} : vector<8x48xf32> to vector<8x16xf32>
    %476 = vector.extract_strided_slice %473 {offsets = [0, 32], sizes = [8, 16], strides = [1, 1]} : vector<8x48xf32> to vector<8x16xf32>
    %477 = vector.extract_strided_slice %467 {offsets = [0, 48], sizes = [8, 16], strides = [1, 1]} : vector<8x64xf32> to vector<8x16xf32>
    %478 = math.tanh %477 : vector<8x16xf32>
    %479 = arith.mulf %475, %457 : vector<8x16xf32>
    %480 = arith.mulf %474, %478 : vector<8x16xf32>
    %481 = arith.addf %479, %480 : vector<8x16xf32>
    %482 = math.tanh %481 : vector<8x16xf32>
    %483 = arith.mulf %476, %482 : vector<8x16xf32>
    %c5_i32_164 = arith.constant 5 : i32
    %c8_i32_165 = arith.constant 8 : i32
    %484 = arith.muli %c5_i32_164, %c8_i32_165 : i32
    %485 = tpu.assume_multiple %484, 8 : i32
    %486 = arith.index_cast %485 : i32 to index
    %c0_166 = arith.constant 0 : index
    %487 = vector.load %arg20[%486, %c0_166] : memref<64x64xf32, #tpu.memory_space<vmem>>, vector<8x64xf32>
    %488 = arith.addf %487, %357 : vector<8x64xf32>
    %c0_167 = arith.constant 0 : index
    %c0_168 = arith.constant 0 : index
    %489 = vector.load %arg7[%c0_167, %c0_168] : memref<16x64xf32, #tpu.memory_space<vmem>>, vector<16x64xf32>
    %cst_169 = arith.constant dense<0.000000e+00> : vector<8x64xf32>
    %490 = tpu.matmul %483, %489, %cst_169 {dimension_numbers = #tpu.dot_dimension_numbers<[1], [0], [0], [1], [0, 0, 1, 1], [], []>} : vector<8x16xf32>, vector<16x64xf32>, vector<8x64xf32> -> vector<8x64xf32>
    %491 = arith.addf %488, %490 : vector<8x64xf32>
    %492 = vector.extract_strided_slice %491 {offsets = [0, 0], sizes = [8, 48], strides = [1, 1]} : vector<8x64xf32> to vector<8x48xf32>
    %493 = arith.negf %492 : vector<8x48xf32>
    %494 = math.exp %493 : vector<8x48xf32>
    %cst_170 = arith.constant 1.000000e+00 : f32
    %495 = vector.broadcast %cst_170 : f32 to vector<8x48xf32>
    %496 = arith.addf %495, %494 : vector<8x48xf32>
    %497 = arith.divf %495, %496 : vector<8x48xf32>
    %498 = vector.extract_strided_slice %497 {offsets = [0, 0], sizes = [8, 16], strides = [1, 1]} : vector<8x48xf32> to vector<8x16xf32>
    %499 = vector.extract_strided_slice %497 {offsets = [0, 16], sizes = [8, 16], strides = [1, 1]} : vector<8x48xf32> to vector<8x16xf32>
    %500 = vector.extract_strided_slice %497 {offsets = [0, 32], sizes = [8, 16], strides = [1, 1]} : vector<8x48xf32> to vector<8x16xf32>
    %501 = vector.extract_strided_slice %491 {offsets = [0, 48], sizes = [8, 16], strides = [1, 1]} : vector<8x64xf32> to vector<8x16xf32>
    %502 = math.tanh %501 : vector<8x16xf32>
    %503 = arith.mulf %499, %481 : vector<8x16xf32>
    %504 = arith.mulf %498, %502 : vector<8x16xf32>
    %505 = arith.addf %503, %504 : vector<8x16xf32>
    %506 = math.tanh %505 : vector<8x16xf32>
    %507 = arith.mulf %500, %506 : vector<8x16xf32>
    %c6_i32_171 = arith.constant 6 : i32
    %c8_i32_172 = arith.constant 8 : i32
    %508 = arith.muli %c6_i32_171, %c8_i32_172 : i32
    %509 = tpu.assume_multiple %508, 8 : i32
    %510 = arith.index_cast %509 : i32 to index
    %c0_173 = arith.constant 0 : index
    %511 = vector.load %arg20[%510, %c0_173] : memref<64x64xf32, #tpu.memory_space<vmem>>, vector<8x64xf32>
    %512 = arith.addf %511, %357 : vector<8x64xf32>
    %c0_174 = arith.constant 0 : index
    %c0_175 = arith.constant 0 : index
    %513 = vector.load %arg7[%c0_174, %c0_175] : memref<16x64xf32, #tpu.memory_space<vmem>>, vector<16x64xf32>
    %cst_176 = arith.constant dense<0.000000e+00> : vector<8x64xf32>
    %514 = tpu.matmul %507, %513, %cst_176 {dimension_numbers = #tpu.dot_dimension_numbers<[1], [0], [0], [1], [0, 0, 1, 1], [], []>} : vector<8x16xf32>, vector<16x64xf32>, vector<8x64xf32> -> vector<8x64xf32>
    %515 = arith.addf %512, %514 : vector<8x64xf32>
    %516 = vector.extract_strided_slice %515 {offsets = [0, 0], sizes = [8, 48], strides = [1, 1]} : vector<8x64xf32> to vector<8x48xf32>
    %517 = arith.negf %516 : vector<8x48xf32>
    %518 = math.exp %517 : vector<8x48xf32>
    %cst_177 = arith.constant 1.000000e+00 : f32
    %519 = vector.broadcast %cst_177 : f32 to vector<8x48xf32>
    %520 = arith.addf %519, %518 : vector<8x48xf32>
    %521 = arith.divf %519, %520 : vector<8x48xf32>
    %522 = vector.extract_strided_slice %521 {offsets = [0, 0], sizes = [8, 16], strides = [1, 1]} : vector<8x48xf32> to vector<8x16xf32>
    %523 = vector.extract_strided_slice %521 {offsets = [0, 16], sizes = [8, 16], strides = [1, 1]} : vector<8x48xf32> to vector<8x16xf32>
    %524 = vector.extract_strided_slice %521 {offsets = [0, 32], sizes = [8, 16], strides = [1, 1]} : vector<8x48xf32> to vector<8x16xf32>
    %525 = vector.extract_strided_slice %515 {offsets = [0, 48], sizes = [8, 16], strides = [1, 1]} : vector<8x64xf32> to vector<8x16xf32>
    %526 = math.tanh %525 : vector<8x16xf32>
    %527 = arith.mulf %523, %505 : vector<8x16xf32>
    %528 = arith.mulf %522, %526 : vector<8x16xf32>
    %529 = arith.addf %527, %528 : vector<8x16xf32>
    %530 = math.tanh %529 : vector<8x16xf32>
    %531 = arith.mulf %524, %530 : vector<8x16xf32>
    %c7_i32_178 = arith.constant 7 : i32
    %c8_i32_179 = arith.constant 8 : i32
    %532 = arith.muli %c7_i32_178, %c8_i32_179 : i32
    %533 = tpu.assume_multiple %532, 8 : i32
    %534 = arith.index_cast %533 : i32 to index
    %c0_180 = arith.constant 0 : index
    %535 = vector.load %arg20[%534, %c0_180] : memref<64x64xf32, #tpu.memory_space<vmem>>, vector<8x64xf32>
    %536 = arith.addf %535, %357 : vector<8x64xf32>
    %c0_181 = arith.constant 0 : index
    %c0_182 = arith.constant 0 : index
    %537 = vector.load %arg7[%c0_181, %c0_182] : memref<16x64xf32, #tpu.memory_space<vmem>>, vector<16x64xf32>
    %cst_183 = arith.constant dense<0.000000e+00> : vector<8x64xf32>
    %538 = tpu.matmul %531, %537, %cst_183 {dimension_numbers = #tpu.dot_dimension_numbers<[1], [0], [0], [1], [0, 0, 1, 1], [], []>} : vector<8x16xf32>, vector<16x64xf32>, vector<8x64xf32> -> vector<8x64xf32>
    %539 = arith.addf %536, %538 : vector<8x64xf32>
    %540 = vector.extract_strided_slice %539 {offsets = [0, 0], sizes = [8, 48], strides = [1, 1]} : vector<8x64xf32> to vector<8x48xf32>
    %541 = arith.negf %540 : vector<8x48xf32>
    %542 = math.exp %541 : vector<8x48xf32>
    %cst_184 = arith.constant 1.000000e+00 : f32
    %543 = vector.broadcast %cst_184 : f32 to vector<8x48xf32>
    %544 = arith.addf %543, %542 : vector<8x48xf32>
    %545 = arith.divf %543, %544 : vector<8x48xf32>
    %546 = vector.extract_strided_slice %545 {offsets = [0, 0], sizes = [8, 16], strides = [1, 1]} : vector<8x48xf32> to vector<8x16xf32>
    %547 = vector.extract_strided_slice %545 {offsets = [0, 16], sizes = [8, 16], strides = [1, 1]} : vector<8x48xf32> to vector<8x16xf32>
    %548 = vector.extract_strided_slice %545 {offsets = [0, 32], sizes = [8, 16], strides = [1, 1]} : vector<8x48xf32> to vector<8x16xf32>
    %549 = vector.extract_strided_slice %539 {offsets = [0, 48], sizes = [8, 16], strides = [1, 1]} : vector<8x64xf32> to vector<8x16xf32>
    %550 = math.tanh %549 : vector<8x16xf32>
    %551 = arith.mulf %547, %529 : vector<8x16xf32>
    %552 = arith.mulf %546, %550 : vector<8x16xf32>
    %553 = arith.addf %551, %552 : vector<8x16xf32>
    %554 = math.tanh %553 : vector<8x16xf32>
    %555 = arith.mulf %548, %554 : vector<8x16xf32>
    %c8_i32_185 = arith.constant 8 : i32
    %c56 = arith.constant 56 : index
    %c0_186 = arith.constant 0 : index
    %556 = vector.load %arg19[%c56, %c0_186] : memref<64x32xf32, #tpu.memory_space<vmem>>, vector<8x32xf32>
    %c0_187 = arith.constant 0 : index
    %c0_188 = arith.constant 0 : index
    %557 = vector.load %arg9[%c0_187, %c0_188] : memref<32x64xf32, #tpu.memory_space<vmem>>, vector<32x64xf32>
    %cst_189 = arith.constant dense<0.000000e+00> : vector<8x64xf32>
    %558 = tpu.matmul %556, %557, %cst_189 {dimension_numbers = #tpu.dot_dimension_numbers<[1], [0], [0], [1], [0, 0, 1, 1], [], []>} : vector<8x32xf32>, vector<32x64xf32>, vector<8x64xf32> -> vector<8x64xf32>
    %c0_190 = arith.constant 0 : index
    %c0_191 = arith.constant 0 : index
    %559 = vector.load %arg10[%c0_190, %c0_191] : memref<1x64xf32, #tpu.memory_space<vmem>>, vector<1x64xf32>
    %560 = vector.shape_cast %559 : vector<1x64xf32> to vector<1x64xf32>
    %561 = vector.broadcast %560 : vector<1x64xf32> to vector<8x64xf32>
    %562 = arith.addf %558, %561 : vector<8x64xf32>
    %563 = vector.extract_strided_slice %562 {offsets = [0, 0], sizes = [8, 48], strides = [1, 1]} : vector<8x64xf32> to vector<8x48xf32>
    %564 = arith.negf %563 : vector<8x48xf32>
    %565 = math.exp %564 : vector<8x48xf32>
    %cst_192 = arith.constant 1.000000e+00 : f32
    %566 = vector.broadcast %cst_192 : f32 to vector<8x48xf32>
    %567 = arith.addf %566, %565 : vector<8x48xf32>
    %568 = arith.divf %566, %567 : vector<8x48xf32>
    %569 = vector.extract_strided_slice %568 {offsets = [0, 0], sizes = [8, 16], strides = [1, 1]} : vector<8x48xf32> to vector<8x16xf32>
    %570 = vector.extract_strided_slice %562 {offsets = [0, 48], sizes = [8, 16], strides = [1, 1]} : vector<8x64xf32> to vector<8x16xf32>
    %571 = math.tanh %570 : vector<8x16xf32>
    %572 = arith.mulf %569, %571 : vector<8x16xf32>
    %573 = vector.extract_strided_slice %568 {offsets = [0, 32], sizes = [8, 16], strides = [1, 1]} : vector<8x48xf32> to vector<8x16xf32>
    %574 = math.tanh %572 : vector<8x16xf32>
    %575 = arith.mulf %573, %574 : vector<8x16xf32>
    %c0_193 = arith.constant 0 : index
    %c0_194 = arith.constant 0 : index
    %576 = vector.load %arg11[%c0_193, %c0_194] : memref<16x1xf32, #tpu.memory_space<vmem>>, vector<16x1xf32>
    %cst_195 = arith.constant dense<0.000000e+00> : vector<8x1xf32>
    %577 = tpu.matmul %555, %576, %cst_195 {dimension_numbers = #tpu.dot_dimension_numbers<[1], [0], [0], [1], [0, 0, 1, 1], [], []>} : vector<8x16xf32>, vector<16x1xf32>, vector<8x1xf32> -> vector<8x1xf32>
    %c0_196 = arith.constant 0 : index
    %c0_197 = arith.constant 0 : index
    %578 = vector.load %arg12[%c0_196, %c0_197] : memref<16x1xf32, #tpu.memory_space<vmem>>, vector<16x1xf32>
    %cst_198 = arith.constant dense<0.000000e+00> : vector<8x1xf32>
    %579 = tpu.matmul %575, %578, %cst_198 {dimension_numbers = #tpu.dot_dimension_numbers<[1], [0], [0], [1], [0, 0, 1, 1], [], []>} : vector<8x16xf32>, vector<16x1xf32>, vector<8x1xf32> -> vector<8x1xf32>
    %580 = arith.addf %577, %579 : vector<8x1xf32>
    %c0_199 = arith.constant 0 : index
    %c0_200 = arith.constant 0 : index
    %581 = vector.load %arg13[%c0_199, %c0_200] : memref<1x1xf32, #tpu.memory_space<vmem>>, vector<1x1xf32>
    %582 = vector.broadcast %581 : vector<1x1xf32> to vector<8x1xf32>
    %583 = arith.addf %580, %582 : vector<8x1xf32>
    %584 = arith.negf %583 : vector<8x1xf32>
    %585 = math.exp %584 : vector<8x1xf32>
    %cst_201 = arith.constant 1.000000e+00 : f32
    %586 = vector.broadcast %cst_201 : f32 to vector<8x1xf32>
    %587 = arith.addf %586, %585 : vector<8x1xf32>
    %588 = arith.divf %586, %587 : vector<8x1xf32>
    %c0_202 = arith.constant 0 : index
    %c0_203 = arith.constant 0 : index
    %589 = vector.load %arg17[%c0_202, %c0_203] : memref<8x1xf32, #tpu.memory_space<vmem>>, vector<8x1xf32>
    tpu.vector_store %arg17[%c0_202, %c0_203], %588 {strides = array<i32>} : memref<8x1xf32, #tpu.memory_space<vmem>>, vector<8x1xf32>,
    %c0_204 = arith.constant 0 : index
    %c0_205 = arith.constant 0 : index
    %590 = vector.load %arg14[%c0_204, %c0_205] : memref<16x128xf32, #tpu.memory_space<vmem>>, vector<16x128xf32>
    %cst_206 = arith.constant dense<0.000000e+00> : vector<8x128xf32>
    %591 = tpu.matmul %555, %590, %cst_206 {dimension_numbers = #tpu.dot_dimension_numbers<[1], [0], [0], [1], [0, 0, 1, 1], [], []>} : vector<8x16xf32>, vector<16x128xf32>, vector<8x128xf32> -> vector<8x128xf32>
    %c0_207 = arith.constant 0 : index
    %c0_208 = arith.constant 0 : index
    %592 = vector.load %arg15[%c0_207, %c0_208] : memref<16x128xf32, #tpu.memory_space<vmem>>, vector<16x128xf32>
    %cst_209 = arith.constant dense<0.000000e+00> : vector<8x128xf32>
    %593 = tpu.matmul %575, %592, %cst_209 {dimension_numbers = #tpu.dot_dimension_numbers<[1], [0], [0], [1], [0, 0, 1, 1], [], []>} : vector<8x16xf32>, vector<16x128xf32>, vector<8x128xf32> -> vector<8x128xf32>
    %594 = arith.addf %591, %593 : vector<8x128xf32>
    %c0_210 = arith.constant 0 : index
    %c0_211 = arith.constant 0 : index
    %595 = vector.load %arg16[%c0_210, %c0_211] : memref<1x128xf32, #tpu.memory_space<vmem>>, vector<1x128xf32>
    %596 = vector.broadcast %595 : vector<1x128xf32> to vector<8x128xf32>
    %597 = arith.addf %594, %596 : vector<8x128xf32>
    %c0_212 = arith.constant 0 : index
    %c0_213 = arith.constant 0 : index
    %598 = vector.load %arg18[%c0_212, %c0_213] : memref<8x128xf32, #tpu.memory_space<vmem>>, vector<8x128xf32>
    tpu.vector_store %arg18[%c0_212, %c0_213], %597 {strides = array<i32>} : memref<8x128xf32, #tpu.memory_space<vmem>>, vector<8x128xf32>,
    return
  }
  func.func @transform_0(%arg0: i32) -> (i32, i32, i32) {
    %c0_i32 = arith.constant 0 : i32
    %c0_i32_0 = arith.constant 0 : i32
    %c0_i32_1 = arith.constant 0 : i32
    return %c0_i32, %arg0, %c0_i32_0 : i32, i32, i32
  }
  func.func @transform_1(%arg0: i32) -> (i32, i32) {
    %c0_i32 = arith.constant 0 : i32
    %c0_i32_0 = arith.constant 0 : i32
    %c0_i32_1 = arith.constant 0 : i32
    return %c0_i32, %c0_i32_0 : i32, i32
  }
  func.func @transform_2(%arg0: i32) -> (i32, i32) {
    %c0_i32 = arith.constant 0 : i32
    %c0_i32_0 = arith.constant 0 : i32
    %c0_i32_1 = arith.constant 0 : i32
    return %c0_i32, %c0_i32_0 : i32, i32
  }
  func.func @transform_3(%arg0: i32) -> (i32, i32) {
    %c0_i32 = arith.constant 0 : i32
    %c0_i32_0 = arith.constant 0 : i32
    %c0_i32_1 = arith.constant 0 : i32
    return %c0_i32, %c0_i32_0 : i32, i32
  }
  func.func @transform_4(%arg0: i32) -> (i32, i32) {
    %c0_i32 = arith.constant 0 : i32
    %c0_i32_0 = arith.constant 0 : i32
    %c0_i32_1 = arith.constant 0 : i32
    return %c0_i32, %c0_i32_0 : i32, i32
  }
  func.func @transform_5(%arg0: i32) -> (i32, i32) {
    %c0_i32 = arith.constant 0 : i32
    %c0_i32_0 = arith.constant 0 : i32
    %c0_i32_1 = arith.constant 0 : i32
    return %c0_i32, %c0_i32_0 : i32, i32
  }
  func.func @transform_6(%arg0: i32) -> (i32, i32) {
    %c0_i32 = arith.constant 0 : i32
    %c0_i32_0 = arith.constant 0 : i32
    %c0_i32_1 = arith.constant 0 : i32
    return %c0_i32, %c0_i32_0 : i32, i32
  }
  func.func @transform_7(%arg0: i32) -> (i32, i32) {
    %c0_i32 = arith.constant 0 : i32
    %c0_i32_0 = arith.constant 0 : i32
    %c0_i32_1 = arith.constant 0 : i32
    return %c0_i32, %c0_i32_0 : i32, i32
  }
  func.func @transform_8(%arg0: i32) -> (i32, i32) {
    %c0_i32 = arith.constant 0 : i32
    %c0_i32_0 = arith.constant 0 : i32
    %c0_i32_1 = arith.constant 0 : i32
    return %c0_i32, %c0_i32_0 : i32, i32
  }
  func.func @transform_9(%arg0: i32) -> (i32, i32) {
    %c0_i32 = arith.constant 0 : i32
    %c0_i32_0 = arith.constant 0 : i32
    %c0_i32_1 = arith.constant 0 : i32
    return %c0_i32, %c0_i32_0 : i32, i32
  }
  func.func @transform_10(%arg0: i32) -> (i32, i32) {
    %c0_i32 = arith.constant 0 : i32
    %c0_i32_0 = arith.constant 0 : i32
    %c0_i32_1 = arith.constant 0 : i32
    return %c0_i32, %c0_i32_0 : i32, i32
  }
  func.func @transform_11(%arg0: i32) -> (i32, i32) {
    %c0_i32 = arith.constant 0 : i32
    %c0_i32_0 = arith.constant 0 : i32
    %c0_i32_1 = arith.constant 0 : i32
    return %c0_i32, %c0_i32_0 : i32, i32
  }
  func.func @transform_12(%arg0: i32) -> (i32, i32) {
    %c0_i32 = arith.constant 0 : i32
    %c0_i32_0 = arith.constant 0 : i32
    %c0_i32_1 = arith.constant 0 : i32
    return %c0_i32, %c0_i32_0 : i32, i32
  }
  func.func @transform_13(%arg0: i32) -> (i32, i32) {
    %c0_i32 = arith.constant 0 : i32
    %c0_i32_0 = arith.constant 0 : i32
    %c0_i32_1 = arith.constant 0 : i32
    return %c0_i32, %c0_i32_0 : i32, i32
  }
  func.func @transform_14(%arg0: i32) -> (i32, i32) {
    %c0_i32 = arith.constant 0 : i32
    %c0_i32_0 = arith.constant 0 : i32
    %c0_i32_1 = arith.constant 0 : i32
    return %c0_i32, %c0_i32_0 : i32, i32
  }
  func.func @transform_15(%arg0: i32) -> (i32, i32) {
    %c0_i32 = arith.constant 0 : i32
    %c0_i32_0 = arith.constant 0 : i32
    %c0_i32_1 = arith.constant 0 : i32
    return %c0_i32, %c0_i32_0 : i32, i32
  }
  func.func @transform_16(%arg0: i32) -> (i32, i32) {
    %c0_i32 = arith.constant 0 : i32
    %c0_i32_0 = arith.constant 0 : i32
    return %arg0, %c0_i32 : i32, i32
  }
  func.func @transform_17(%arg0: i32) -> (i32, i32) {
    %c0_i32 = arith.constant 0 : i32
    %c0_i32_0 = arith.constant 0 : i32
    return %arg0, %c0_i32 : i32, i32
  }
}

</mosaic_0001>

<llo_original>
// kernel: tpu_custom_call.1
$region0: #{tpu_custom_call.1}
  #allocation0 [shape = 'u32[]', space=smem, size = 0x4, offset = 0x4, fixed_abs, tag = 'smem constant byte address 0x4 - core index']
  #allocation1 [shape = 'u32[72,128]{1,0:T(1,128)}', space=vmem, size = 0x9000, scoped, tag = 'internal scratch']
  #allocation2 [shape = 'f32[64,32]{1,0:T(8,128)}', space=vmem, size = 0x8000, scoped, tag = 'scratch operand']
  #allocation3 [shape = 'f32[64,64]{1,0:T(8,128)}', space=vmem, size = 0x8000, scoped, tag = 'scratch operand']
  #allocation4 [shape = 'f32[1,1]{1,0:T(1,128)S(1)}', space=vmem, size = 0x200, scoped, tag = 'scoped memory for tpu_custom_call.1']
  %s0 = inlined_call_operand.vmem [shape: f32[8,8,1], index: 0, kind: input, shape index: {}]
  %s1 = inlined_call_operand.vmem [shape: f32[32,128], index: 1, kind: input, shape index: {}]
  %s2 = inlined_call_operand.vmem [shape: f32[1,128], index: 2, kind: input, shape index: {}]
  %s3 = inlined_call_operand.vmem [shape: f32[1,128], index: 3, kind: input, shape index: {}]
  %s4 = inlined_call_operand.vmem [shape: f32[1,128], index: 4, kind: input, shape index: {}]
  %s5 = inlined_call_operand.vmem [shape: f32[32,64], index: 5, kind: input, shape index: {}]
  %s6 = inlined_call_operand.vmem [shape: f32[16,64], index: 6, kind: input, shape index: {}]
  %s7 = inlined_call_operand.vmem [shape: f32[1,64], index: 7, kind: input, shape index: {}]
  %s8 = inlined_call_operand.hbm [shape: f32[32,64], index: 8, kind: input, shape index: {}]
  %s9 = inlined_call_operand.vmem [shape: f32[1,64], index: 9, kind: input, shape index: {}]
  %s10 = inlined_call_operand.vmem [shape: f32[16,1], index: 10, kind: input, shape index: {}]
  %s11 = inlined_call_operand.vmem [shape: f32[16,1], index: 11, kind: input, shape index: {}]
  %s12 = inlined_call_operand.<no memory space> [shape: f32[1,1], index: 12, kind: input, shape index: {}]
  %s13 = inlined_call_operand.vmem [shape: f32[16,128], index: 13, kind: input, shape index: {}]
  %s14 = inlined_call_operand.hbm [shape: f32[16,128], index: 14, kind: input, shape index: {}]
  %s15 = inlined_call_operand.vmem [shape: f32[1,128], index: 15, kind: input, shape index: {}]
  %s16 = inlined_call_operand.vmem [shape: f32[8,1], index: 16, kind: output, shape index: {0}]
  %s17 = inlined_call_operand.hbm [shape: f32[8,128], index: 17, kind: output, shape index: {1}]
  %18 = xla_tuple %s16, %s17
  %s19 = sld [smem:[#allocation0]]
  $region90: #{tpu_custom_call.1} parent=0
    _
  %s21 = ssub.s32 1, %s19
  %s22 = scalar_select 0, %s21, %s19
  %v23 = vstv %s12
  %24 = vst [vmem:[#allocation4] sm:$0x1] %v23
  $region1: #{tpu_custom_call.1} parent=0
    #allocation5 [shape = 'u8[16384]{0}', space=vmem, size = 0x4000, scoped, tag = 'input window, operand 8, single buffered']
    #allocation6 [shape = 's32[1]{0}', space=sflag, size = 0x4, scoped, tag = 'scoped memory for tpu_custom_call.1']
    #allocation7 [shape = 's32[1]{0}', space=sflag, size = 0x4, scoped, tag = 'scoped memory for tpu_custom_call.1']
    #allocation8 [shape = 'u8[8192]{0}', space=vmem, size = 0x2000, scoped, tag = 'input window, operand 14, single buffered']
    #allocation9 [shape = 's32[1]{0}', space=sflag, size = 0x4, scoped, tag = 'scoped memory for tpu_custom_call.1']
    #allocation10 [shape = 'u8[4096]{0}', space=vmem, size = 0x1000, scoped, tag = 'output window, operand 1, single buffered']
    %25 = vsyncpa [#allocation6], 0
    %26 = vsyncpa [#allocation9], 0
    %27 = vsyncpa [#allocation7], 0
    // Predicated region
    $region2: #{tpu_custom_call.1} parent=1 // pred_check
      _
    $region3: #{tpu_custom_call.1} parent=1 // pred_check_branch
      %29 = sbr.rel (0) target = $region5
    $region4: #{tpu_custom_call.1} parent=1 // pred_region
      _
    $region5: #{tpu_custom_call.1} parent=1 // pred_fallthru
      _
    // Predicated region
    $region6: #{tpu_custom_call.1} parent=1 // pred_check
      _
    $region7: #{tpu_custom_call.1} parent=1 // pred_check_branch
      %31 = sbr.rel (0) target = $region9
    $region8: #{tpu_custom_call.1} parent=1 // pred_region
      _
    $region9: #{tpu_custom_call.1} parent=1 // pred_fallthru
      _
    // Predicated region
    $region10: #{tpu_custom_call.1} parent=1 // pred_check
      _
    $region11: #{tpu_custom_call.1} parent=1 // pred_check_branch
      %33 = sbr.rel (0) target = $region13
    $region12: #{tpu_custom_call.1} parent=1 // pred_region
      _
    $region13: #{tpu_custom_call.1} parent=1 // pred_fallthru
      _
    // Predicated region
    $region14: #{tpu_custom_call.1} parent=1 // pred_check
      _
    $region15: #{tpu_custom_call.1} parent=1 // pred_check_branch
      %35 = sbr.rel (0) target = $region17
    $region16: #{tpu_custom_call.1} parent=1 // pred_region
      _
    $region17: #{tpu_custom_call.1} parent=1 // pred_fallthru
      _
    // Predicated region
    $region18: #{tpu_custom_call.1} parent=1 // pred_check
      _
    $region19: #{tpu_custom_call.1} parent=1 // pred_check_branch
      %37 = sbr.rel (0) target = $region21
    $region20: #{tpu_custom_call.1} parent=1 // pred_region
      _
    $region21: #{tpu_custom_call.1} parent=1 // pred_fallthru
      _
    // Predicated region
    $region22: #{tpu_custom_call.1} parent=1 // pred_check
      _
    $region23: #{tpu_custom_call.1} parent=1 // pred_check_branch
      %39 = sbr.rel (0) target = $region25
    $region24: #{tpu_custom_call.1} parent=1 // pred_region
      _
    $region25: #{tpu_custom_call.1} parent=1 // pred_fallthru
      _
    // Predicated region
    $region26: #{tpu_custom_call.1} parent=1 // pred_check
      _
    $region27: #{tpu_custom_call.1} parent=1 // pred_check_branch
      %41 = sbr.rel (0) target = $region29
    $region28: #{tpu_custom_call.1} parent=1 // pred_region
      _
    $region29: #{tpu_custom_call.1} parent=1 // pred_fallthru
      _
    // Predicated region
    $region30: #{tpu_custom_call.1} parent=1 // pred_check
      _
    $region31: #{tpu_custom_call.1} parent=1 // pred_check_branch
      %43 = sbr.rel (0) target = $region33
    $region32: #{tpu_custom_call.1} parent=1 // pred_region
      _
    $region33: #{tpu_custom_call.1} parent=1 // pred_fallthru
      _
    // Predicated region
    $region34: #{tpu_custom_call.1} parent=1 // pred_check
      _
    $region35: #{tpu_custom_call.1} parent=1 // pred_check_branch
      %45 = sbr.rel (0) target = $region37
    $region36: #{tpu_custom_call.1} parent=1 // pred_region
      %47 = vsyncadd [#allocation6], 0
      %s48 = sshll.u32 %s8, 4
      %s49 = int_to_ptr.hbm [resolvable:$true] %s48
      %s50 = sshll.u32 [#allocation5], 4
      %s51 = int_to_ptr.vmem [resolvable:$true] %s50
      %56 = dma.hbm_to_vmem [thread:$0]  %s49, 512, %s51, [#allocation6], 128, 128, 8
    $region37: #{tpu_custom_call.1} parent=1 // pred_fallthru
      _
    // Predicated region
    $region38: #{tpu_custom_call.1} parent=1 // pred_check
      _
    $region39: #{tpu_custom_call.1} parent=1 // pred_check_branch
      %58 = sbr.rel (0) target = $region41
    $region40: #{tpu_custom_call.1} parent=1 // pred_region
      _
    $region41: #{tpu_custom_call.1} parent=1 // pred_fallthru
      _
    // Predicated region
    $region42: #{tpu_custom_call.1} parent=1 // pred_check
      _
    $region43: #{tpu_custom_call.1} parent=1 // pred_check_branch
      %60 = sbr.rel (0) target = $region45
    $region44: #{tpu_custom_call.1} parent=1 // pred_region
      _
    $region45: #{tpu_custom_call.1} parent=1 // pred_fallthru
      _
    // Predicated region
    $region46: #{tpu_custom_call.1} parent=1 // pred_check
      _
    $region47: #{tpu_custom_call.1} parent=1 // pred_check_branch
      %62 = sbr.rel (0) target = $region49
    $region48: #{tpu_custom_call.1} parent=1 // pred_region
      _
    $region49: #{tpu_custom_call.1} parent=1 // pred_fallthru
      _
    // Predicated region
    $region50: #{tpu_custom_call.1} parent=1 // pred_check
      _
    $region51: #{tpu_custom_call.1} parent=1 // pred_check_branch
      %64 = sbr.rel (0) target = $region53
    $region52: #{tpu_custom_call.1} parent=1 // pred_region
      _
    $region53: #{tpu_custom_call.1} parent=1 // pred_fallthru
      _
    // Predicated region
    $region54: #{tpu_custom_call.1} parent=1 // pred_check
      _
    $region55: #{tpu_custom_call.1} parent=1 // pred_check_branch
      %66 = sbr.rel (0) target = $region57
    $region56: #{tpu_custom_call.1} parent=1 // pred_region
      _
    $region57: #{tpu_custom_call.1} parent=1 // pred_fallthru
      _
    // Predicated region
    $region58: #{tpu_custom_call.1} parent=1 // pred_check
      _
    $region59: #{tpu_custom_call.1} parent=1 // pred_check_branch
      %68 = sbr.rel (0) target = $region61
    $region60: #{tpu_custom_call.1} parent=1 // pred_region
      %70 = vsyncadd [#allocation9], 0
      %s71 = sshll.u32 %s14, 4
      %s72 = int_to_ptr.hbm [resolvable:$true] %s71
      %s73 = sshll.u32 [#allocation8], 4
      %s74 = int_to_ptr.vmem [resolvable:$true] %s73
      %79 = dma.hbm_to_vmem [thread:$0]  %s72, 256, %s74, [#allocation9], 128, 128, 8
    $region61: #{tpu_custom_call.1} parent=1 // pred_fallthru
      _
    // Predicated region
    $region62: #{tpu_custom_call.1} parent=1 // pred_check
      _
    $region63: #{tpu_custom_call.1} parent=1 // pred_check_branch
      %81 = sbr.rel (0) target = $region65
    $region64: #{tpu_custom_call.1} parent=1 // pred_region
      _
    $region65: #{tpu_custom_call.1} parent=1 // pred_fallthru
      _
    // Predicated region
    $region66: #{tpu_custom_call.1} parent=1 // pred_check
      _
    $region67: #{tpu_custom_call.1} parent=1 // pred_check_branch
      %83 = sbr.rel (0) target = $region69
    $region68: #{tpu_custom_call.1} parent=1 // pred_region
      %85 = dma.done [#allocation6], 512
    $region69: #{tpu_custom_call.1} parent=1 // pred_fallthru
      _
    // Predicated region
    $region70: #{tpu_custom_call.1} parent=1 // pred_check
      _
    $region71: #{tpu_custom_call.1} parent=1 // pred_check_branch
      %87 = sbr.rel (0) target = $region73
    $region72: #{tpu_custom_call.1} parent=1 // pred_region
      %89 = dma.done [#allocation9], 256
    $region73: #{tpu_custom_call.1} parent=1 // pred_fallthru
      _
    %v90 = vld [vmem:[%s2] sm:$0x1]
    %v91 = vld [vmem:[%s3] sm:$0x1]
    %v92 = vld [vmem:[%s4] sm:$0x1]
    %v94 = vperm.slane %v92, 0
    %v96 = vlaneseq
    %v97 = vand.u32 %v96, 127
    %vm98 = vcmp.lt.s32.totalorder %v97, 16
    %vm99 = vcmp.ge.s32.totalorder %v97, 16
    %v100 = vld [vmem:[%s0] sm:$0xff]
    %s101 = scalar_lea.vmem %s0, 56
    %v102 = vld [vmem:[%s101] sm:$0xff]
    %v103 = vld [vmem:[%s1] sm:$0xff]
    %v104 = vld [vmem:[%s1 + $0x8] sm:$0xff]
    %v105 = vld [vmem:[%s1 + $0x10] sm:$0xff]
    %v106 = vld [vmem:[%s1 + $0x18] sm:$0xff]
    %108 = vset.pattern.permute.xlu0 0
    %109 = vperm.xlu0 %108, %v100
    %v110 = vpop.permute.xlu0 %109
    %v113 = vperm.slane %v90, 0
    %v115 = vmul.f32 %v110, %v113
    %vm116 = vcmask 261120
    %v118 = vsel %vm116, 0.0, 0
    %120 = vmatpush.msra.mxu0 0.0
    %121 = vmatpush.msra.mxu0 0.0
    %122 = vmatpush.msra.mxu0 0.0
    %123 = vmatpush.msra.mxu0 0.0
    %124 = vmatpush.msra.mxu0 0.0
    %125 = vmatpush.msra.mxu0 0.0
    %126 = vmatpush.msra.mxu0 0.0
    %127 = vmatpush.msra.mxu0 0.0
    %128 = vmatpush.msra.mxu0 0.0
    %129 = vmatpush.msra.mxu0 0.0
    %130 = vmatpush.msra.mxu0 0.0
    %131 = vmatpush.msra.mxu0 0.0
    %132 = vmatpush.msra.mxu0 %v106
    %133 = vmatpush.msra.mxu0 %v105
    %134 = vmatpush.msra.mxu0 %v104
    %135 = vmatpush.msra.mxu0 %v103
    %136 = vmatmul.f32.gmra.mxu0 %v118
    %v137 = vpop.f32.mrf.mxu0
    %v138 = vadd.f32 %v115, %v137
    %139 = vdwg.mxu0
    %141 = vset.pattern.permute.xlu0 0
    %142 = vperm.xlu0 %141, %v102
    %v143 = vpop.permute.xlu0 %142
    %v146 = vperm.slane %v91, 0
    %v148 = vmul.f32 %v143, %v146
    %v149 = vadd.f32 %v138, %v148
    %v150 = vadd.f32 %v149, %v94
    %v151 = vxor.u32 %v150, 2147483648
    %v152 = vmul.f32 %v151, 1.442695
    %v153 = vpow.pop %v152
    %v154 = vadd.f32 %v153, 1.0
    %v155 = vrcp.pop %v154
    %v156 = vmul.f32 %v154, %v155
    %v157 = vsub.f32 1.0, %v156
    %v158 = vmul.f32 %v155, %v157
    %v159 = vadd.f32 %v155, %v158
    %vm160 = vweird.f32 %v154
    %vm161 = vweird.f32 %v155
    %vm162 = vmor %vm160, %vm161
    %v163 = vsel %vm162, %v155, %v159
    %v164 = vand.u32 2147483647, %v154
    %vm165 = vcmp.eq.f32.partialorder %v164, 8.507059e+37
    %v166 = vand.u32 %v154, 2147483648
    %v167 = vor.u32 1.1754944e-38, %v166
    %v168 = vsel %vm165, %v167, %v163
    %v169 = vmul.f32 1.0, %v168
    %v170 = vtanh.pop %v150
    %v171 = vmul.f32 %v169, 0.0
    %173 = vrot.lane.b32.xlu0 %v170, 32
    %v174 = vpop.permute.xlu0 %173
    %v176 = vmul.f32 %v169, %v174
    %178 = vrot.lane.b32.xlu0 %v176, 32
    %v179 = vpop.permute.xlu0 %178
    %v181 = vadd.f32 %v171, %v179
    %v182 = vtanh.pop %v181
    %184 = vrot.lane.b32.xlu0 %v182, 32
    %v185 = vpop.permute.xlu0 %184
    %v187 = vmul.f32 %v169, %v185
    %189 = vrot.lane.b32.xlu0 %v187, 64
    %v190 = vpop.permute.xlu0 %189
    %vm192 = vmand %vm116, %vm98
    %193 = vst.msk [vmem:[#allocation2] sm:$0xff] %vm192, %v190
    %s194 = scalar_lea.vmem [#allocation2], 56
    %vm195 = vmand %vm116, %vm99
    %196 = vst.msk [vmem:[%s194] sm:$0xff] %vm195, %v190
    %s197 = scalar_lea.vmem %s0, 8
    %v198 = vld [vmem:[%s197] sm:$0xff]
    %s199 = scalar_lea.vmem %s0, 48
    %v200 = vld [vmem:[%s199] sm:$0xff]
    %v201 = vld [vmem:[%s1] sm:$0xff]
    %v202 = vld [vmem:[%s1 + $0x8] sm:$0xff]
    %v203 = vld [vmem:[%s1 + $0x10] sm:$0xff]
    %v204 = vld [vmem:[%s1 + $0x18] sm:$0xff]
    %206 = vset.pattern.permute.xlu0 0
    %207 = vperm.xlu0 %206, %v198
    %v208 = vpop.permute.xlu0 %207
    %v210 = vmul.f32 %v208, %v113
    %v211 = vsel %vm116, %v190, 0
    %213 = vmatpush.msra.mxu0 0.0
    %214 = vmatpush.msra.mxu0 0.0
    %215 = vmatpush.msra.mxu0 0.0
    %216 = vmatpush.msra.mxu0 0.0
    %217 = vmatpush.msra.mxu0 0.0
    %218 = vmatpush.msra.mxu0 0.0
    %219 = vmatpush.msra.mxu0 0.0
    %220 = vmatpush.msra.mxu0 0.0
    %221 = vmatpush.msra.mxu0 0.0
    %222 = vmatpush.msra.mxu0 0.0
    %223 = vmatpush.msra.mxu0 0.0
    %224 = vmatpush.msra.mxu0 0.0
    %225 = vmatpush.msra.mxu0 %v204
    %226 = vmatpush.msra.mxu0 %v203
    %227 = vmatpush.msra.mxu0 %v202
    %228 = vmatpush.msra.mxu0 %v201
    %229 = vmatmul.f32.gmra.mxu0 %v211
    %v230 = vpop.f32.mrf.mxu0
    %v231 = vadd.f32 %v210, %v230
    %232 = vdwg.mxu0
    %234 = vset.pattern.permute.xlu0 0
    %235 = vperm.xlu0 %234, %v200
    %v236 = vpop.permute.xlu0 %235
    %v238 = vmul.f32 %v236, %v146
    %v239 = vadd.f32 %v231, %v238
    %v240 = vadd.f32 %v239, %v94
    %v241 = vxor.u32 %v240, 2147483648
    %v242 = vmul.f32 %v241, 1.442695
    %v243 = vpow.pop %v242
    %v244 = vadd.f32 %v243, 1.0
    %v245 = vrcp.pop %v244
    %v246 = vmul.f32 %v244, %v245
    %v247 = vsub.f32 1.0, %v246
    %v248 = vmul.f32 %v245, %v247
    %v249 = vadd.f32 %v245, %v248
    %vm250 = vweird.f32 %v244
    %vm251 = vweird.f32 %v245
    %vm252 = vmor %vm250, %vm251
    %v253 = vsel %vm252, %v245, %v249
    %v254 = vand.u32 2147483647, %v244
    %vm255 = vcmp.eq.f32.partialorder %v254, 8.507059e+37
    %v256 = vand.u32 %v244, 2147483648
    %v257 = vor.u32 1.1754944e-38, %v256
    %v258 = vsel %vm255, %v257, %v253
    %v259 = vmul.f32 1.0, %v258
    %v260 = vtanh.pop %v240
    %v261 = vmul.f32 %v259, %v181
    %263 = vrot.lane.b32.xlu0 %v260, 32
    %v264 = vpop.permute.xlu0 %263
    %v266 = vmul.f32 %v259, %v264
    %268 = vrot.lane.b32.xlu0 %v266, 32
    %v269 = vpop.permute.xlu0 %268
    %v271 = vadd.f32 %v261, %v269
    %v272 = vtanh.pop %v271
    %274 = vrot.lane.b32.xlu0 %v272, 32
    %v275 = vpop.permute.xlu0 %274
    %v277 = vmul.f32 %v259, %v275
    %279 = vrot.lane.b32.xlu0 %v277, 64
    %v280 = vpop.permute.xlu0 %279
    %s282 = scalar_lea.vmem [#allocation2], 8
    %283 = vst.msk [vmem:[%s282] sm:$0xff] %vm192, %v280
    %s284 = scalar_lea.vmem [#allocation2], 48
    %285 = vst.msk [vmem:[%s284] sm:$0xff] %vm195, %v280
    %s286 = scalar_lea.vmem %s0, 16
    %v287 = vld [vmem:[%s286] sm:$0xff]
    %s288 = scalar_lea.vmem %s0, 40
    %v289 = vld [vmem:[%s288] sm:$0xff]
    %v290 = vld [vmem:[%s1] sm:$0xff]
    %v291 = vld [vmem:[%s1 + $0x8] sm:$0xff]
    %v292 = vld [vmem:[%s1 + $0x10] sm:$0xff]
    %v293 = vld [vmem:[%s1 + $0x18] sm:$0xff]
    %295 = vset.pattern.permute.xlu0 0
    %296 = vperm.xlu0 %295, %v287
    %v297 = vpop.permute.xlu0 %296
    %v299 = vmul.f32 %v297, %v113
    %v300 = vsel %vm116, %v280, 0
    %302 = vmatpush.msra.mxu0 0.0
    %303 = vmatpush.msra.mxu0 0.0
    %304 = vmatpush.msra.mxu0 0.0
    %305 = vmatpush.msra.mxu0 0.0
    %306 = vmatpush.msra.mxu0 0.0
    %307 = vmatpush.msra.mxu0 0.0
    %308 = vmatpush.msra.mxu0 0.0
    %309 = vmatpush.msra.mxu0 0.0
    %310 = vmatpush.msra.mxu0 0.0
    %311 = vmatpush.msra.mxu0 0.0
    %312 = vmatpush.msra.mxu0 0.0
    %313 = vmatpush.msra.mxu0 0.0
    %314 = vmatpush.msra.mxu0 %v293
    %315 = vmatpush.msra.mxu0 %v292
    %316 = vmatpush.msra.mxu0 %v291
    %317 = vmatpush.msra.mxu0 %v290
    %318 = vmatmul.f32.gmra.mxu0 %v300
    %v319 = vpop.f32.mrf.mxu0
    %v320 = vadd.f32 %v299, %v319
    %321 = vdwg.mxu0
    %323 = vset.pattern.permute.xlu0 0
    %324 = vperm.xlu0 %323, %v289
    %v325 = vpop.permute.xlu0 %324
    %v327 = vmul.f32 %v325, %v146
    %v328 = vadd.f32 %v320, %v327
    %v329 = vadd.f32 %v328, %v94
    %v330 = vxor.u32 %v329, 2147483648
    %v331 = vmul.f32 %v330, 1.442695
    %v332 = vpow.pop %v331
    %v333 = vadd.f32 %v332, 1.0
    %v334 = vrcp.pop %v333
    %v335 = vmul.f32 %v333, %v334
    %v336 = vsub.f32 1.0, %v335
    %v337 = vmul.f32 %v334, %v336
    %v338 = vadd.f32 %v334, %v337
    %vm339 = vweird.f32 %v333
    %vm340 = vweird.f32 %v334
    %vm341 = vmor %vm339, %vm340
    %v342 = vsel %vm341, %v334, %v338
    %v343 = vand.u32 2147483647, %v333
    %vm344 = vcmp.eq.f32.partialorder %v343, 8.507059e+37
    %v345 = vand.u32 %v333, 2147483648
    %v346 = vor.u32 1.1754944e-38, %v345
    %v347 = vsel %vm344, %v346, %v342
    %v348 = vmul.f32 1.0, %v347
    %v349 = vtanh.pop %v329
    %v350 = vmul.f32 %v348, %v271
    %352 = vrot.lane.b32.xlu0 %v349, 32
    %v353 = vpop.permute.xlu0 %352
    %v355 = vmul.f32 %v348, %v353
    %357 = vrot.lane.b32.xlu0 %v355, 32
    %v358 = vpop.permute.xlu0 %357
    %v360 = vadd.f32 %v350, %v358
    %v361 = vtanh.pop %v360
    %363 = vrot.lane.b32.xlu0 %v361, 32
    %v364 = vpop.permute.xlu0 %363
    %v366 = vmul.f32 %v348, %v364
    %368 = vrot.lane.b32.xlu0 %v366, 64
    %v369 = vpop.permute.xlu0 %368
    %s371 = scalar_lea.vmem [#allocation2], 16
    %372 = vst.msk [vmem:[%s371] sm:$0xff] %vm192, %v369
    %s373 = scalar_lea.vmem [#allocation2], 40
    %374 = vst.msk [vmem:[%s373] sm:$0xff] %vm195, %v369
    %s375 = scalar_lea.vmem %s0, 24
    %v376 = vld [vmem:[%s375] sm:$0xff]
    %s377 = scalar_lea.vmem %s0, 32
    %v378 = vld [vmem:[%s377] sm:$0xff]
    %v379 = vld [vmem:[%s1] sm:$0xff]
    %v380 = vld [vmem:[%s1 + $0x8] sm:$0xff]
    %v381 = vld [vmem:[%s1 + $0x10] sm:$0xff]
    %v382 = vld [vmem:[%s1 + $0x18] sm:$0xff]
    %384 = vset.pattern.permute.xlu0 0
    %385 = vperm.xlu0 %384, %v376
    %v386 = vpop.permute.xlu0 %385
    %v388 = vmul.f32 %v386, %v113
    %v389 = vsel %vm116, %v369, 0
    %391 = vmatpush.msra.mxu0 0.0
    %392 = vmatpush.msra.mxu0 0.0
    %393 = vmatpush.msra.mxu0 0.0
    %394 = vmatpush.msra.mxu0 0.0
    %395 = vmatpush.msra.mxu0 0.0
    %396 = vmatpush.msra.mxu0 0.0
    %397 = vmatpush.msra.mxu0 0.0
    %398 = vmatpush.msra.mxu0 0.0
    %399 = vmatpush.msra.mxu0 0.0
    %400 = vmatpush.msra.mxu0 0.0
    %401 = vmatpush.msra.mxu0 0.0
    %402 = vmatpush.msra.mxu0 0.0
    %403 = vmatpush.msra.mxu0 %v382
    %404 = vmatpush.msra.mxu0 %v381
    %405 = vmatpush.msra.mxu0 %v380
    %406 = vmatpush.msra.mxu0 %v379
    %407 = vmatmul.f32.gmra.mxu0 %v389
    %v408 = vpop.f32.mrf.mxu0
    %v409 = vadd.f32 %v388, %v408
    %410 = vdwg.mxu0
    %412 = vset.pattern.permute.xlu0 0
    %413 = vperm.xlu0 %412, %v378
    %v414 = vpop.permute.xlu0 %413
    %v416 = vmul.f32 %v414, %v146
    %v417 = vadd.f32 %v409, %v416
    %v418 = vadd.f32 %v417, %v94
    %v419 = vxor.u32 %v418, 2147483648
    %v420 = vmul.f32 %v419, 1.442695
    %v421 = vpow.pop %v420
    %v422 = vadd.f32 %v421, 1.0
    %v423 = vrcp.pop %v422
    %v424 = vmul.f32 %v422, %v423
    %v425 = vsub.f32 1.0, %v424
    %v426 = vmul.f32 %v423, %v425
    %v427 = vadd.f32 %v423, %v426
    %vm428 = vweird.f32 %v422
    %vm429 = vweird.f32 %v423
    %vm430 = vmor %vm428, %vm429
    %v431 = vsel %vm430, %v423, %v427
    %v432 = vand.u32 2147483647, %v422
    %vm433 = vcmp.eq.f32.partialorder %v432, 8.507059e+37
    %v434 = vand.u32 %v422, 2147483648
    %v435 = vor.u32 1.1754944e-38, %v434
    %v436 = vsel %vm433, %v435, %v431
    %v437 = vmul.f32 1.0, %v436
    %v438 = vtanh.pop %v418
    %v439 = vmul.f32 %v437, %v360
    %441 = vrot.lane.b32.xlu0 %v438, 32
    %v442 = vpop.permute.xlu0 %441
    %v444 = vmul.f32 %v437, %v442
    %446 = vrot.lane.b32.xlu0 %v444, 32
    %v447 = vpop.permute.xlu0 %446
    %v449 = vadd.f32 %v439, %v447
    %v450 = vtanh.pop %v449
    %452 = vrot.lane.b32.xlu0 %v450, 32
    %v453 = vpop.permute.xlu0 %452
    %v455 = vmul.f32 %v437, %v453
    %457 = vrot.lane.b32.xlu0 %v455, 64
    %v458 = vpop.permute.xlu0 %457
    %s460 = scalar_lea.vmem [#allocation2], 24
    %461 = vst.msk [vmem:[%s460] sm:$0xff] %vm192, %v458
    %s462 = scalar_lea.vmem [#allocation2], 32
    %463 = vst.msk [vmem:[%s462] sm:$0xff] %vm195, %v458
    %v464 = vld [vmem:[%s377] sm:$0xff]
    %v465 = vld [vmem:[%s375] sm:$0xff]
    %v466 = vld [vmem:[%s1] sm:$0xff]
    %v467 = vld [vmem:[%s1 + $0x8] sm:$0xff]
    %v468 = vld [vmem:[%s1 + $0x10] sm:$0xff]
    %v469 = vld [vmem:[%s1 + $0x18] sm:$0xff]
    %471 = vset.pattern.permute.xlu0 0
    %472 = vperm.xlu0 %471, %v464
    %v473 = vpop.permute.xlu0 %472
    %v475 = vmul.f32 %v473, %v113
    %v476 = vsel %vm116, %v458, 0
    %478 = vmatpush.msra.mxu0 0.0
    %479 = vmatpush.msra.mxu0 0.0
    %480 = vmatpush.msra.mxu0 0.0
    %481 = vmatpush.msra.mxu0 0.0
    %482 = vmatpush.msra.mxu0 0.0
    %483 = vmatpush.msra.mxu0 0.0
    %484 = vmatpush.msra.mxu0 0.0
    %485 = vmatpush.msra.mxu0 0.0
    %486 = vmatpush.msra.mxu0 0.0
    %487 = vmatpush.msra.mxu0 0.0
    %488 = vmatpush.msra.mxu0 0.0
    %489 = vmatpush.msra.mxu0 0.0
    %490 = vmatpush.msra.mxu0 %v469
    %491 = vmatpush.msra.mxu0 %v468
    %492 = vmatpush.msra.mxu0 %v467
    %493 = vmatpush.msra.mxu0 %v466
    %494 = vmatmul.f32.gmra.mxu0 %v476
    %v495 = vpop.f32.mrf.mxu0
    %v496 = vadd.f32 %v475, %v495
    %497 = vdwg.mxu0
    %499 = vset.pattern.permute.xlu0 0
    %500 = vperm.xlu0 %499, %v465
    %v501 = vpop.permute.xlu0 %500
    %v503 = vmul.f32 %v501, %v146
    %v504 = vadd.f32 %v496, %v503
    %v505 = vadd.f32 %v504, %v94
    %v506 = vxor.u32 %v505, 2147483648
    %v507 = vmul.f32 %v506, 1.442695
    %v508 = vpow.pop %v507
    %v509 = vadd.f32 %v508, 1.0
    %v510 = vrcp.pop %v509
    %v511 = vmul.f32 %v509, %v510
    %v512 = vsub.f32 1.0, %v511
    %v513 = vmul.f32 %v510, %v512
    %v514 = vadd.f32 %v510, %v513
    %vm515 = vweird.f32 %v509
    %vm516 = vweird.f32 %v510
    %vm517 = vmor %vm515, %vm516
    %v518 = vsel %vm517, %v510, %v514
    %v519 = vand.u32 2147483647, %v509
    %vm520 = vcmp.eq.f32.partialorder %v519, 8.507059e+37
    %v521 = vand.u32 %v509, 2147483648
    %v522 = vor.u32 1.1754944e-38, %v521
    %v523 = vsel %vm520, %v522, %v518
    %v524 = vmul.f32 1.0, %v523
    %v525 = vtanh.pop %v505
    %v526 = vmul.f32 %v524, %v449
    %528 = vrot.lane.b32.xlu0 %v525, 32
    %v529 = vpop.permute.xlu0 %528
    %v531 = vmul.f32 %v524, %v529
    %533 = vrot.lane.b32.xlu0 %v531, 32
    %v534 = vpop.permute.xlu0 %533
    %v536 = vadd.f32 %v526, %v534
    %v537 = vtanh.pop %v536
    %539 = vrot.lane.b32.xlu0 %v537, 32
    %v540 = vpop.permute.xlu0 %539
    %v542 = vmul.f32 %v524, %v540
    %544 = vrot.lane.b32.xlu0 %v542, 64
    %v545 = vpop.permute.xlu0 %544
    %547 = vst.msk [vmem:[%s462] sm:$0xff] %vm192, %v545
    %548 = vst.msk [vmem:[%s460] sm:$0xff] %vm195, %v545
    %v549 = vld [vmem:[%s288] sm:$0xff]
    %v550 = vld [vmem:[%s286] sm:$0xff]
    %v551 = vld [vmem:[%s1] sm:$0xff]
    %v552 = vld [vmem:[%s1 + $0x8] sm:$0xff]
    %v553 = vld [vmem:[%s1 + $0x10] sm:$0xff]
    %v554 = vld [vmem:[%s1 + $0x18] sm:$0xff]
    %556 = vset.pattern.permute.xlu0 0
    %557 = vperm.xlu0 %556, %v549
    %v558 = vpop.permute.xlu0 %557
    %v560 = vmul.f32 %v558, %v113
    %v561 = vsel %vm116, %v545, 0
    %563 = vmatpush.msra.mxu0 0.0
    %564 = vmatpush.msra.mxu0 0.0
    %565 = vmatpush.msra.mxu0 0.0
    %566 = vmatpush.msra.mxu0 0.0
    %567 = vmatpush.msra.mxu0 0.0
    %568 = vmatpush.msra.mxu0 0.0
    %569 = vmatpush.msra.mxu0 0.0
    %570 = vmatpush.msra.mxu0 0.0
    %571 = vmatpush.msra.mxu0 0.0
    %572 = vmatpush.msra.mxu0 0.0
    %573 = vmatpush.msra.mxu0 0.0
    %574 = vmatpush.msra.mxu0 0.0
    %575 = vmatpush.msra.mxu0 %v554
    %576 = vmatpush.msra.mxu0 %v553
    %577 = vmatpush.msra.mxu0 %v552
    %578 = vmatpush.msra.mxu0 %v551
    %579 = vmatmul.f32.gmra.mxu0 %v561
    %v580 = vpop.f32.mrf.mxu0
    %v581 = vadd.f32 %v560, %v580
    %582 = vdwg.mxu0
    %584 = vset.pattern.permute.xlu0 0
    %585 = vperm.xlu0 %584, %v550
    %v586 = vpop.permute.xlu0 %585
    %v588 = vmul.f32 %v586, %v146
    %v589 = vadd.f32 %v581, %v588
    %v590 = vadd.f32 %v589, %v94
    %v591 = vxor.u32 %v590, 2147483648
    %v592 = vmul.f32 %v591, 1.442695
    %v593 = vpow.pop %v592
    %v594 = vadd.f32 %v593, 1.0
    %v595 = vrcp.pop %v594
    %v596 = vmul.f32 %v594, %v595
    %v597 = vsub.f32 1.0, %v596
    %v598 = vmul.f32 %v595, %v597
    %v599 = vadd.f32 %v595, %v598
    %vm600 = vweird.f32 %v594
    %vm601 = vweird.f32 %v595
    %vm602 = vmor %vm600, %vm601
    %v603 = vsel %vm602, %v595, %v599
    %v604 = vand.u32 2147483647, %v594
    %vm605 = vcmp.eq.f32.partialorder %v604, 8.507059e+37
    %v606 = vand.u32 %v594, 2147483648
    %v607 = vor.u32 1.1754944e-38, %v606
    %v608 = vsel %vm605, %v607, %v603
    %v609 = vmul.f32 1.0, %v608
    %v610 = vtanh.pop %v590
    %v611 = vmul.f32 %v609, %v536
    %613 = vrot.lane.b32.xlu0 %v610, 32
    %v614 = vpop.permute.xlu0 %613
    %v616 = vmul.f32 %v609, %v614
    %618 = vrot.lane.b32.xlu0 %v616, 32
    %v619 = vpop.permute.xlu0 %618
    %v621 = vadd.f32 %v611, %v619
    %v622 = vtanh.pop %v621
    %624 = vrot.lane.b32.xlu0 %v622, 32
    %v625 = vpop.permute.xlu0 %624
    %v627 = vmul.f32 %v609, %v625
    %629 = vrot.lane.b32.xlu0 %v627, 64
    %v630 = vpop.permute.xlu0 %629
    %632 = vst.msk [vmem:[%s373] sm:$0xff] %vm192, %v630
    %633 = vst.msk [vmem:[%s371] sm:$0xff] %vm195, %v630
    %v634 = vld [vmem:[%s199] sm:$0xff]
    %v635 = vld [vmem:[%s197] sm:$0xff]
    %v636 = vld [vmem:[%s1] sm:$0xff]
    %v637 = vld [vmem:[%s1 + $0x8] sm:$0xff]
    %v638 = vld [vmem:[%s1 + $0x10] sm:$0xff]
    %v639 = vld [vmem:[%s1 + $0x18] sm:$0xff]
    %641 = vset.pattern.permute.xlu0 0
    %642 = vperm.xlu0 %641, %v634
    %v643 = vpop.permute.xlu0 %642
    %v645 = vmul.f32 %v643, %v113
    %v646 = vsel %vm116, %v630, 0
    %648 = vmatpush.msra.mxu0 0.0
    %649 = vmatpush.msra.mxu0 0.0
    %650 = vmatpush.msra.mxu0 0.0
    %651 = vmatpush.msra.mxu0 0.0
    %652 = vmatpush.msra.mxu0 0.0
    %653 = vmatpush.msra.mxu0 0.0
    %654 = vmatpush.msra.mxu0 0.0
    %655 = vmatpush.msra.mxu0 0.0
    %656 = vmatpush.msra.mxu0 0.0
    %657 = vmatpush.msra.mxu0 0.0
    %658 = vmatpush.msra.mxu0 0.0
    %659 = vmatpush.msra.mxu0 0.0
    %660 = vmatpush.msra.mxu0 %v639
    %661 = vmatpush.msra.mxu0 %v638
    %662 = vmatpush.msra.mxu0 %v637
    %663 = vmatpush.msra.mxu0 %v636
    %664 = vmatmul.f32.gmra.mxu0 %v646
    %v665 = vpop.f32.mrf.mxu0
    %v666 = vadd.f32 %v645, %v665
    %667 = vdwg.mxu0
    %669 = vset.pattern.permute.xlu0 0
    %670 = vperm.xlu0 %669, %v635
    %v671 = vpop.permute.xlu0 %670
    %v673 = vmul.f32 %v671, %v146
    %v674 = vadd.f32 %v666, %v673
    %v675 = vadd.f32 %v674, %v94
    %v676 = vxor.u32 %v675, 2147483648
    %v677 = vmul.f32 %v676, 1.442695
    %v678 = vpow.pop %v677
    %v679 = vadd.f32 %v678, 1.0
    %v680 = vrcp.pop %v679
    %v681 = vmul.f32 %v679, %v680
    %v682 = vsub.f32 1.0, %v681
    %v683 = vmul.f32 %v680, %v682
    %v684 = vadd.f32 %v680, %v683
    %vm685 = vweird.f32 %v679
    %vm686 = vweird.f32 %v680
    %vm687 = vmor %vm685, %vm686
    %v688 = vsel %vm687, %v680, %v684
    %v689 = vand.u32 2147483647, %v679
    %vm690 = vcmp.eq.f32.partialorder %v689, 8.507059e+37
    %v691 = vand.u32 %v679, 2147483648
    %v692 = vor.u32 1.1754944e-38, %v691
    %v693 = vsel %vm690, %v692, %v688
    %v694 = vmul.f32 1.0, %v693
    %v695 = vtanh.pop %v675
    %v696 = vmul.f32 %v694, %v621
    %698 = vrot.lane.b32.xlu0 %v695, 32
    %v699 = vpop.permute.xlu0 %698
    %v701 = vmul.f32 %v694, %v699
    %703 = vrot.lane.b32.xlu0 %v701, 32
    %v704 = vpop.permute.xlu0 %703
    %v706 = vadd.f32 %v696, %v704
    %v707 = vtanh.pop %v706
    %709 = vrot.lane.b32.xlu0 %v707, 32
    %v710 = vpop.permute.xlu0 %709
    %v712 = vmul.f32 %v694, %v710
    %714 = vrot.lane.b32.xlu0 %v712, 64
    %v715 = vpop.permute.xlu0 %714
    %717 = vst.msk [vmem:[%s284] sm:$0xff] %vm192, %v715
    %718 = vst.msk [vmem:[%s282] sm:$0xff] %vm195, %v715
    %v719 = vld [vmem:[%s101] sm:$0xff]
    %v720 = vld [vmem:[%s0] sm:$0xff]
    %v721 = vld [vmem:[%s1] sm:$0xff]
    %v722 = vld [vmem:[%s1 + $0x8] sm:$0xff]
    %v723 = vld [vmem:[%s1 + $0x10] sm:$0xff]
    %v724 = vld [vmem:[%s1 + $0x18] sm:$0xff]
    %726 = vset.pattern.permute.xlu0 0
    %727 = vperm.xlu0 %726, %v719
    %v728 = vpop.permute.xlu0 %727
    %v730 = vmul.f32 %v728, %v113
    %v731 = vsel %vm116, %v715, 0
    %733 = vmatpush.msra.mxu0 0.0
    %734 = vmatpush.msra.mxu0 0.0
    %735 = vmatpush.msra.mxu0 0.0
    %736 = vmatpush.msra.mxu0 0.0
    %737 = vmatpush.msra.mxu0 0.0
    %738 = vmatpush.msra.mxu0 0.0
    %739 = vmatpush.msra.mxu0 0.0
    %740 = vmatpush.msra.mxu0 0.0
    %741 = vmatpush.msra.mxu0 0.0
    %742 = vmatpush.msra.mxu0 0.0
    %743 = vmatpush.msra.mxu0 0.0
    %744 = vmatpush.msra.mxu0 0.0
    %745 = vmatpush.msra.mxu0 %v724
    %746 = vmatpush.msra.mxu0 %v723
    %747 = vmatpush.msra.mxu0 %v722
    %748 = vmatpush.msra.mxu0 %v721
    %749 = vmatmul.f32.gmra.mxu0 %v731
    %v750 = vpop.f32.mrf.mxu0
    %v751 = vadd.f32 %v730, %v750
    %752 = vdwg.mxu0
    %754 = vset.pattern.permute.xlu0 0
    %755 = vperm.xlu0 %754, %v720
    %v756 = vpop.permute.xlu0 %755
    %v758 = vmul.f32 %v756, %v146
    %v759 = vadd.f32 %v751, %v758
    %v760 = vadd.f32 %v759, %v94
    %v761 = vxor.u32 %v760, 2147483648
    %v762 = vmul.f32 %v761, 1.442695
    %v763 = vpow.pop %v762
    %v764 = vadd.f32 %v763, 1.0
    %v765 = vrcp.pop %v764
    %v766 = vmul.f32 %v764, %v765
    %v767 = vsub.f32 1.0, %v766
    %v768 = vmul.f32 %v765, %v767
    %v769 = vadd.f32 %v765, %v768
    %vm770 = vweird.f32 %v764
    %vm771 = vweird.f32 %v765
    %vm772 = vmor %vm770, %vm771
    %v773 = vsel %vm772, %v765, %v769
    %v774 = vand.u32 2147483647, %v764
    %vm775 = vcmp.eq.f32.partialorder %v774, 8.507059e+37
    %v776 = vand.u32 %v764, 2147483648
    %v777 = vor.u32 1.1754944e-38, %v776
    %v778 = vsel %vm775, %v777, %v773
    %v779 = vmul.f32 1.0, %v778
    %v780 = vtanh.pop %v760
    %v781 = vmul.f32 %v779, %v706
    %783 = vrot.lane.b32.xlu0 %v780, 32
    %v784 = vpop.permute.xlu0 %783
    %v786 = vmul.f32 %v779, %v784
    %788 = vrot.lane.b32.xlu0 %v786, 32
    %v789 = vpop.permute.xlu0 %788
    %v791 = vadd.f32 %v781, %v789
    %v792 = vtanh.pop %v791
    %794 = vrot.lane.b32.xlu0 %v792, 32
    %v795 = vpop.permute.xlu0 %794
    %v797 = vmul.f32 %v779, %v795
    %799 = vrot.lane.b32.xlu0 %v797, 64
    %v800 = vpop.permute.xlu0 %799
    %802 = vst.msk [vmem:[%s194] sm:$0xff] %vm192, %v800
    %803 = vst.msk [vmem:[#allocation2] sm:$0xff] %vm195, %v800
    %v804 = vld [vmem:[%s7] sm:$0x1]
    %v806 = vperm.slane %v804, 0
    %v808 = vld [vmem:[#allocation2] sm:$0xff]
    %v809 = vld [vmem:[#allocation2 + $0x8] sm:$0xff]
    %v810 = vld [vmem:[#allocation2 + $0x10] sm:$0xff]
    %v811 = vld [vmem:[#allocation2 + $0x18] sm:$0xff]
    %v812 = vld [vmem:[#allocation2 + $0x20] sm:$0xff]
    %v813 = vld [vmem:[#allocation2 + $0x28] sm:$0xff]
    %v814 = vld [vmem:[#allocation2 + $0x30] sm:$0xff]
    %v815 = vld [vmem:[#allocation2 + $0x38] sm:$0xff]
    %v816 = vld [vmem:[%s5] sm:$0xff]
    %v817 = vld [vmem:[%s5 + $0x8] sm:$0xff]
    %v818 = vld [vmem:[%s5 + $0x10] sm:$0xff]
    %v819 = vld [vmem:[%s5 + $0x18] sm:$0xff]
    %v821 = vsel %vm116, %v808, 0
    %v824 = vsel %vm116, %v809, 0
    %v827 = vsel %vm116, %v810, 0
    %v830 = vsel %vm116, %v811, 0
    %v833 = vsel %vm116, %v812, 0
    %v836 = vsel %vm116, %v813, 0
    %v839 = vsel %vm116, %v814, 0
    %v842 = vsel %vm116, %v815, 0
    %844 = vmatpush.msra.mxu0 0.0
    %845 = vmatpush.msra.mxu0 0.0
    %846 = vmatpush.msra.mxu0 0.0
    %847 = vmatpush.msra.mxu0 0.0
    %848 = vmatpush.msra.mxu0 0.0
    %849 = vmatpush.msra.mxu0 0.0
    %850 = vmatpush.msra.mxu0 0.0
    %851 = vmatpush.msra.mxu0 0.0
    %852 = vmatpush.msra.mxu0 0.0
    %853 = vmatpush.msra.mxu0 0.0
    %854 = vmatpush.msra.mxu0 0.0
    %855 = vmatpush.msra.mxu0 0.0
    %856 = vmatpush.msra.mxu0 %v819
    %857 = vmatpush.msra.mxu0 %v818
    %858 = vmatpush.msra.mxu0 %v817
    %859 = vmatpush.msra.mxu0 %v816
    %860 = vmatmul.f32.gmra.mxu0 %v821
    %v861 = vpop.f32.mrf.mxu0
    %v862 = vadd.f32 0.0, %v861
    %863 = vmatmul.f32.gmra.mxu0 %v824
    %v864 = vpop.f32.mrf.mxu0
    %v865 = vadd.f32 0.0, %v864
    %866 = vmatmul.f32.gmra.mxu0 %v827
    %v867 = vpop.f32.mrf.mxu0
    %v868 = vadd.f32 0.0, %v867
    %869 = vmatmul.f32.gmra.mxu0 %v830
    %v870 = vpop.f32.mrf.mxu0
    %v871 = vadd.f32 0.0, %v870
    %872 = vmatmul.f32.gmra.mxu0 %v833
    %v873 = vpop.f32.mrf.mxu0
    %v874 = vadd.f32 0.0, %v873
    %875 = vmatmul.f32.gmra.mxu0 %v836
    %v876 = vpop.f32.mrf.mxu0
    %v877 = vadd.f32 0.0, %v876
    %878 = vmatmul.f32.gmra.mxu0 %v839
    %v879 = vpop.f32.mrf.mxu0
    %v880 = vadd.f32 0.0, %v879
    %881 = vmatmul.f32.gmra.mxu0 %v842
    %v882 = vpop.f32.mrf.mxu0
    %v883 = vadd.f32 0.0, %v882
    %884 = vdwg.mxu0
    %vm885 = vcmask 523264
    %886 = vst.msk [vmem:[#allocation3] sm:$0xff] %vm885, %v862
    %887 = vst.msk [vmem:[#allocation3 + $0x8] sm:$0xff] %vm885, %v865
    %888 = vst.msk [vmem:[#allocation3 + $0x10] sm:$0xff] %vm885, %v868
    %889 = vst.msk [vmem:[#allocation3 + $0x18] sm:$0xff] %vm885, %v871
    %890 = vst.msk [vmem:[#allocation3 + $0x20] sm:$0xff] %vm885, %v874
    %891 = vst.msk [vmem:[#allocation3 + $0x28] sm:$0xff] %vm885, %v877
    %892 = vst.msk [vmem:[#allocation3 + $0x30] sm:$0xff] %vm885, %v880
    %893 = vst.msk [vmem:[#allocation3 + $0x38] sm:$0xff] %vm885, %v883
    %v894 = vld [vmem:[#allocation3] sm:$0xff]
    %v895 = vadd.f32 %v894, %v806
    %v896 = vld [vmem:[%s6] sm:$0xff]
    %v897 = vld [vmem:[%s6 + $0x8] sm:$0xff]
    %vm898 = vcmask 130048
    %v899 = vsel %vm898, 0.0, 0
    %901 = vmatpush.msra.mxu0 0.0
    %902 = vmatpush.msra.mxu0 0.0
    %903 = vmatpush.msra.mxu0 0.0
    %904 = vmatpush.msra.mxu0 0.0
    %905 = vmatpush.msra.mxu0 0.0
    %906 = vmatpush.msra.mxu0 0.0
    %907 = vmatpush.msra.mxu0 0.0
    %908 = vmatpush.msra.mxu0 0.0
    %909 = vmatpush.msra.mxu0 0.0
    %910 = vmatpush.msra.mxu0 0.0
    %911 = vmatpush.msra.mxu0 0.0
    %912 = vmatpush.msra.mxu0 0.0
    %913 = vmatpush.msra.mxu0 0.0
    %914 = vmatpush.msra.mxu0 0.0
    %915 = vmatpush.msra.mxu0 %v897
    %916 = vmatpush.msra.mxu0 %v896
    %917 = vmatmul.f32.gmra.mxu0 %v899
    %v918 = vpop.f32.mrf.mxu0
    %v919 = vadd.f32 0.0, %v918
    %920 = vdwg.mxu0
    %v921 = vadd.f32 %v895, %v919
    %v922 = vxor.u32 %v921, 2147483648
    %v923 = vmul.f32 %v922, 1.442695
    %v924 = vpow.pop %v923
    %v925 = vadd.f32 %v924, 1.0
    %v926 = vrcp.pop %v925
    %v927 = vmul.f32 %v925, %v926
    %v928 = vsub.f32 1.0, %v927
    %v929 = vmul.f32 %v926, %v928
    %v930 = vadd.f32 %v926, %v929
    %vm931 = vweird.f32 %v925
    %vm932 = vweird.f32 %v926
    %vm933 = vmor %vm931, %vm932
    %v934 = vsel %vm933, %v926, %v930
    %v935 = vand.u32 2147483647, %v925
    %vm936 = vcmp.eq.f32.partialorder %v935, 8.507059e+37
    %v937 = vand.u32 %v925, 2147483648
    %v938 = vor.u32 1.1754944e-38, %v937
    %v939 = vsel %vm936, %v938, %v934
    %v940 = vmul.f32 1.0, %v939
    %v941 = vtanh.pop %v921
    %v942 = vmul.f32 %v940, 0.0
    %944 = vrot.lane.b32.xlu0 %v941, 80
    %v945 = vpop.permute.xlu0 %944
    %v947 = vmul.f32 %v940, %v945
    %949 = vrot.lane.b32.xlu0 %v947, 16
    %v950 = vpop.permute.xlu0 %949
    %v952 = vadd.f32 %v942, %v950
    %v953 = vtanh.pop %v952
    %955 = vrot.lane.b32.xlu0 %v953, 16
    %v956 = vpop.permute.xlu0 %955
    %v958 = vmul.f32 %v940, %v956
    %s959 = scalar_lea.vmem [#allocation3], 8
    %v960 = vld [vmem:[%s959] sm:$0xff]
    %v961 = vadd.f32 %v960, %v806
    %963 = vrot.lane.b32.xlu0 %v958, 96
    %v964 = vpop.permute.xlu0 %963
    %v965 = vsel %vm898, %v964, 0
    %967 = vmatpush.msra.mxu0 0.0
    %968 = vmatpush.msra.mxu0 0.0
    %969 = vmatpush.msra.mxu0 0.0
    %970 = vmatpush.msra.mxu0 0.0
    %971 = vmatpush.msra.mxu0 0.0
    %972 = vmatpush.msra.mxu0 0.0
    %973 = vmatpush.msra.mxu0 0.0
    %974 = vmatpush.msra.mxu0 0.0
    %975 = vmatpush.msra.mxu0 0.0
    %976 = vmatpush.msra.mxu0 0.0
    %977 = vmatpush.msra.mxu0 0.0
    %978 = vmatpush.msra.mxu0 0.0
    %979 = vmatpush.msra.mxu0 0.0
    %980 = vmatpush.msra.mxu0 0.0
    %981 = vmatpush.msra.mxu0 %v897
    %982 = vmatpush.msra.mxu0 %v896
    %983 = vmatmul.f32.gmra.mxu0 %v965
    %v984 = vpop.f32.mrf.mxu0
    %v985 = vadd.f32 0.0, %v984
    %986 = vdwg.mxu0
    %v987 = vadd.f32 %v961, %v985
    %v988 = vxor.u32 %v987, 2147483648
    %v989 = vmul.f32 %v988, 1.442695
    %v990 = vpow.pop %v989
    %v991 = vadd.f32 %v990, 1.0
    %v992 = vrcp.pop %v991
    %v993 = vmul.f32 %v991, %v992
    %v994 = vsub.f32 1.0, %v993
    %v995 = vmul.f32 %v992, %v994
    %v996 = vadd.f32 %v992, %v995
    %vm997 = vweird.f32 %v991
    %vm998 = vweird.f32 %v992
    %vm999 = vmor %vm997, %vm998
    %v1000 = vsel %vm999, %v992, %v996
    %v1001 = vand.u32 2147483647, %v991
    %vm1002 = vcmp.eq.f32.partialorder %v1001, 8.507059e+37
    %v1003 = vand.u32 %v991, 2147483648
    %v1004 = vor.u32 1.1754944e-38, %v1003
    %v1005 = vsel %vm1002, %v1004, %v1000
    %v1006 = vmul.f32 1.0, %v1005
    %v1007 = vtanh.pop %v987
    %v1008 = vmul.f32 %v1006, %v952
    %1010 = vrot.lane.b32.xlu0 %v1007, 80
    %v1011 = vpop.permute.xlu0 %1010
    %v1013 = vmul.f32 %v1006, %v1011
    %1015 = vrot.lane.b32.xlu0 %v1013, 16
    %v1016 = vpop.permute.xlu0 %1015
    %v1018 = vadd.f32 %v1008, %v1016
    %v1019 = vtanh.pop %v1018
    %1021 = vrot.lane.b32.xlu0 %v1019, 16
    %v1022 = vpop.permute.xlu0 %1021
    %v1024 = vmul.f32 %v1006, %v1022
    %s1025 = scalar_lea.vmem [#allocation3], 16
    %v1026 = vld [vmem:[%s1025] sm:$0xff]
    %v1027 = vadd.f32 %v1026, %v806
    %1029 = vrot.lane.b32.xlu0 %v1024, 96
    %v1030 = vpop.permute.xlu0 %1029
    %v1031 = vsel %vm898, %v1030, 0
    %1033 = vmatpush.msra.mxu0 0.0
    %1034 = vmatpush.msra.mxu0 0.0
    %1035 = vmatpush.msra.mxu0 0.0
    %1036 = vmatpush.msra.mxu0 0.0
    %1037 = vmatpush.msra.mxu0 0.0
    %1038 = vmatpush.msra.mxu0 0.0
    %1039 = vmatpush.msra.mxu0 0.0
    %1040 = vmatpush.msra.mxu0 0.0
    %1041 = vmatpush.msra.mxu0 0.0
    %1042 = vmatpush.msra.mxu0 0.0
    %1043 = vmatpush.msra.mxu0 0.0
    %1044 = vmatpush.msra.mxu0 0.0
    %1045 = vmatpush.msra.mxu0 0.0
    %1046 = vmatpush.msra.mxu0 0.0
    %1047 = vmatpush.msra.mxu0 %v897
    %1048 = vmatpush.msra.mxu0 %v896
    %1049 = vmatmul.f32.gmra.mxu0 %v1031
    %v1050 = vpop.f32.mrf.mxu0
    %v1051 = vadd.f32 0.0, %v1050
    %1052 = vdwg.mxu0
    %v1053 = vadd.f32 %v1027, %v1051
    %v1054 = vxor.u32 %v1053, 2147483648
    %v1055 = vmul.f32 %v1054, 1.442695
    %v1056 = vpow.pop %v1055
    %v1057 = vadd.f32 %v1056, 1.0
    %v1058 = vrcp.pop %v1057
    %v1059 = vmul.f32 %v1057, %v1058
    %v1060 = vsub.f32 1.0, %v1059
    %v1061 = vmul.f32 %v1058, %v1060
    %v1062 = vadd.f32 %v1058, %v1061
    %vm1063 = vweird.f32 %v1057
    %vm1064 = vweird.f32 %v1058
    %vm1065 = vmor %vm1063, %vm1064
    %v1066 = vsel %vm1065, %v1058, %v1062
    %v1067 = vand.u32 2147483647, %v1057
    %vm1068 = vcmp.eq.f32.partialorder %v1067, 8.507059e+37
    %v1069 = vand.u32 %v1057, 2147483648
    %v1070 = vor.u32 1.1754944e-38, %v1069
    %v1071 = vsel %vm1068, %v1070, %v1066
    %v1072 = vmul.f32 1.0, %v1071
    %v1073 = vtanh.pop %v1053
    %v1074 = vmul.f32 %v1072, %v1018
    %1076 = vrot.lane.b32.xlu0 %v1073, 80
    %v1077 = vpop.permute.xlu0 %1076
    %v1079 = vmul.f32 %v1072, %v1077
    %1081 = vrot.lane.b32.xlu0 %v1079, 16
    %v1082 = vpop.permute.xlu0 %1081
    %v1084 = vadd.f32 %v1074, %v1082
    %v1085 = vtanh.pop %v1084
    %1087 = vrot.lane.b32.xlu0 %v1085, 16
    %v1088 = vpop.permute.xlu0 %1087
    %v1090 = vmul.f32 %v1072, %v1088
    %s1091 = scalar_lea.vmem [#allocation3], 24
    %v1092 = vld [vmem:[%s1091] sm:$0xff]
    %v1093 = vadd.f32 %v1092, %v806
    %1095 = vrot.lane.b32.xlu0 %v1090, 96
    %v1096 = vpop.permute.xlu0 %1095
    %v1097 = vsel %vm898, %v1096, 0
    %1099 = vmatpush.msra.mxu0 0.0
    %1100 = vmatpush.msra.mxu0 0.0
    %1101 = vmatpush.msra.mxu0 0.0
    %1102 = vmatpush.msra.mxu0 0.0
    %1103 = vmatpush.msra.mxu0 0.0
    %1104 = vmatpush.msra.mxu0 0.0
    %1105 = vmatpush.msra.mxu0 0.0
    %1106 = vmatpush.msra.mxu0 0.0
    %1107 = vmatpush.msra.mxu0 0.0
    %1108 = vmatpush.msra.mxu0 0.0
    %1109 = vmatpush.msra.mxu0 0.0
    %1110 = vmatpush.msra.mxu0 0.0
    %1111 = vmatpush.msra.mxu0 0.0
    %1112 = vmatpush.msra.mxu0 0.0
    %1113 = vmatpush.msra.mxu0 %v897
    %1114 = vmatpush.msra.mxu0 %v896
    %1115 = vmatmul.f32.gmra.mxu0 %v1097
    %v1116 = vpop.f32.mrf.mxu0
    %v1117 = vadd.f32 0.0, %v1116
    %1118 = vdwg.mxu0
    %v1119 = vadd.f32 %v1093, %v1117
    %v1120 = vxor.u32 %v1119, 2147483648
    %v1121 = vmul.f32 %v1120, 1.442695
    %v1122 = vpow.pop %v1121
    %v1123 = vadd.f32 %v1122, 1.0
    %v1124 = vrcp.pop %v1123
    %v1125 = vmul.f32 %v1123, %v1124
    %v1126 = vsub.f32 1.0, %v1125
    %v1127 = vmul.f32 %v1124, %v1126
    %v1128 = vadd.f32 %v1124, %v1127
    %vm1129 = vweird.f32 %v1123
    %vm1130 = vweird.f32 %v1124
    %vm1131 = vmor %vm1129, %vm1130
    %v1132 = vsel %vm1131, %v1124, %v1128
    %v1133 = vand.u32 2147483647, %v1123
    %vm1134 = vcmp.eq.f32.partialorder %v1133, 8.507059e+37
    %v1135 = vand.u32 %v1123, 2147483648
    %v1136 = vor.u32 1.1754944e-38, %v1135
    %v1137 = vsel %vm1134, %v1136, %v1132
    %v1138 = vmul.f32 1.0, %v1137
    %v1139 = vtanh.pop %v1119
    %v1140 = vmul.f32 %v1138, %v1084
    %1142 = vrot.lane.b32.xlu0 %v1139, 80
    %v1143 = vpop.permute.xlu0 %1142
    %v1145 = vmul.f32 %v1138, %v1143
    %1147 = vrot.lane.b32.xlu0 %v1145, 16
    %v1148 = vpop.permute.xlu0 %1147
    %v1150 = vadd.f32 %v1140, %v1148
    %v1151 = vtanh.pop %v1150
    %1153 = vrot.lane.b32.xlu0 %v1151, 16
    %v1154 = vpop.permute.xlu0 %1153
    %v1156 = vmul.f32 %v1138, %v1154
    %s1157 = scalar_lea.vmem [#allocation3], 32
    %v1158 = vld [vmem:[%s1157] sm:$0xff]
    %v1159 = vadd.f32 %v1158, %v806
    %1161 = vrot.lane.b32.xlu0 %v1156, 96
    %v1162 = vpop.permute.xlu0 %1161
    %v1163 = vsel %vm898, %v1162, 0
    %1165 = vmatpush.msra.mxu0 0.0
    %1166 = vmatpush.msra.mxu0 0.0
    %1167 = vmatpush.msra.mxu0 0.0
    %1168 = vmatpush.msra.mxu0 0.0
    %1169 = vmatpush.msra.mxu0 0.0
    %1170 = vmatpush.msra.mxu0 0.0
    %1171 = vmatpush.msra.mxu0 0.0
    %1172 = vmatpush.msra.mxu0 0.0
    %1173 = vmatpush.msra.mxu0 0.0
    %1174 = vmatpush.msra.mxu0 0.0
    %1175 = vmatpush.msra.mxu0 0.0
    %1176 = vmatpush.msra.mxu0 0.0
    %1177 = vmatpush.msra.mxu0 0.0
    %1178 = vmatpush.msra.mxu0 0.0
    %1179 = vmatpush.msra.mxu0 %v897
    %1180 = vmatpush.msra.mxu0 %v896
    %1181 = vmatmul.f32.gmra.mxu0 %v1163
    %v1182 = vpop.f32.mrf.mxu0
    %v1183 = vadd.f32 0.0, %v1182
    %1184 = vdwg.mxu0
    %v1185 = vadd.f32 %v1159, %v1183
    %v1186 = vxor.u32 %v1185, 2147483648
    %v1187 = vmul.f32 %v1186, 1.442695
    %v1188 = vpow.pop %v1187
    %v1189 = vadd.f32 %v1188, 1.0
    %v1190 = vrcp.pop %v1189
    %v1191 = vmul.f32 %v1189, %v1190
    %v1192 = vsub.f32 1.0, %v1191
    %v1193 = vmul.f32 %v1190, %v1192
    %v1194 = vadd.f32 %v1190, %v1193
    %vm1195 = vweird.f32 %v1189
    %vm1196 = vweird.f32 %v1190
    %vm1197 = vmor %vm1195, %vm1196
    %v1198 = vsel %vm1197, %v1190, %v1194
    %v1199 = vand.u32 2147483647, %v1189
    %vm1200 = vcmp.eq.f32.partialorder %v1199, 8.507059e+37
    %v1201 = vand.u32 %v1189, 2147483648
    %v1202 = vor.u32 1.1754944e-38, %v1201
    %v1203 = vsel %vm1200, %v1202, %v1198
    %v1204 = vmul.f32 1.0, %v1203
    %v1205 = vtanh.pop %v1185
    %v1206 = vmul.f32 %v1204, %v1150
    %1208 = vrot.lane.b32.xlu0 %v1205, 80
    %v1209 = vpop.permute.xlu0 %1208
    %v1211 = vmul.f32 %v1204, %v1209
    %1213 = vrot.lane.b32.xlu0 %v1211, 16
    %v1214 = vpop.permute.xlu0 %1213
    %v1216 = vadd.f32 %v1206, %v1214
    %v1217 = vtanh.pop %v1216
    %1219 = vrot.lane.b32.xlu0 %v1217, 16
    %v1220 = vpop.permute.xlu0 %1219
    %v1222 = vmul.f32 %v1204, %v1220
    %s1223 = scalar_lea.vmem [#allocation3], 40
    %v1224 = vld [vmem:[%s1223] sm:$0xff]
    %v1225 = vadd.f32 %v1224, %v806
    %1227 = vrot.lane.b32.xlu0 %v1222, 96
    %v1228 = vpop.permute.xlu0 %1227
    %v1229 = vsel %vm898, %v1228, 0
    %1231 = vmatpush.msra.mxu0 0.0
    %1232 = vmatpush.msra.mxu0 0.0
    %1233 = vmatpush.msra.mxu0 0.0
    %1234 = vmatpush.msra.mxu0 0.0
    %1235 = vmatpush.msra.mxu0 0.0
    %1236 = vmatpush.msra.mxu0 0.0
    %1237 = vmatpush.msra.mxu0 0.0
    %1238 = vmatpush.msra.mxu0 0.0
    %1239 = vmatpush.msra.mxu0 0.0
    %1240 = vmatpush.msra.mxu0 0.0
    %1241 = vmatpush.msra.mxu0 0.0
    %1242 = vmatpush.msra.mxu0 0.0
    %1243 = vmatpush.msra.mxu0 0.0
    %1244 = vmatpush.msra.mxu0 0.0
    %1245 = vmatpush.msra.mxu0 %v897
    %1246 = vmatpush.msra.mxu0 %v896
    %1247 = vmatmul.f32.gmra.mxu0 %v1229
    %v1248 = vpop.f32.mrf.mxu0
    %v1249 = vadd.f32 0.0, %v1248
    %1250 = vdwg.mxu0
    %v1251 = vadd.f32 %v1225, %v1249
    %v1252 = vxor.u32 %v1251, 2147483648
    %v1253 = vmul.f32 %v1252, 1.442695
    %v1254 = vpow.pop %v1253
    %v1255 = vadd.f32 %v1254, 1.0
    %v1256 = vrcp.pop %v1255
    %v1257 = vmul.f32 %v1255, %v1256
    %v1258 = vsub.f32 1.0, %v1257
    %v1259 = vmul.f32 %v1256, %v1258
    %v1260 = vadd.f32 %v1256, %v1259
    %vm1261 = vweird.f32 %v1255
    %vm1262 = vweird.f32 %v1256
    %vm1263 = vmor %vm1261, %vm1262
    %v1264 = vsel %vm1263, %v1256, %v1260
    %v1265 = vand.u32 2147483647, %v1255
    %vm1266 = vcmp.eq.f32.partialorder %v1265, 8.507059e+37
    %v1267 = vand.u32 %v1255, 2147483648
    %v1268 = vor.u32 1.1754944e-38, %v1267
    %v1269 = vsel %vm1266, %v1268, %v1264
    %v1270 = vmul.f32 1.0, %v1269
    %v1271 = vtanh.pop %v1251
    %v1272 = vmul.f32 %v1270, %v1216
    %1274 = vrot.lane.b32.xlu0 %v1271, 80
    %v1275 = vpop.permute.xlu0 %1274
    %v1277 = vmul.f32 %v1270, %v1275
    %1279 = vrot.lane.b32.xlu0 %v1277, 16
    %v1280 = vpop.permute.xlu0 %1279
    %v1282 = vadd.f32 %v1272, %v1280
    %v1283 = vtanh.pop %v1282
    %1285 = vrot.lane.b32.xlu0 %v1283, 16
    %v1286 = vpop.permute.xlu0 %1285
    %v1288 = vmul.f32 %v1270, %v1286
    %s1289 = scalar_lea.vmem [#allocation3], 48
    %v1290 = vld [vmem:[%s1289] sm:$0xff]
    %v1291 = vadd.f32 %v1290, %v806
    %1293 = vrot.lane.b32.xlu0 %v1288, 96
    %v1294 = vpop.permute.xlu0 %1293
    %v1295 = vsel %vm898, %v1294, 0
    %1297 = vmatpush.msra.mxu0 0.0
    %1298 = vmatpush.msra.mxu0 0.0
    %1299 = vmatpush.msra.mxu0 0.0
    %1300 = vmatpush.msra.mxu0 0.0
    %1301 = vmatpush.msra.mxu0 0.0
    %1302 = vmatpush.msra.mxu0 0.0
    %1303 = vmatpush.msra.mxu0 0.0
    %1304 = vmatpush.msra.mxu0 0.0
    %1305 = vmatpush.msra.mxu0 0.0
    %1306 = vmatpush.msra.mxu0 0.0
    %1307 = vmatpush.msra.mxu0 0.0
    %1308 = vmatpush.msra.mxu0 0.0
    %1309 = vmatpush.msra.mxu0 0.0
    %1310 = vmatpush.msra.mxu0 0.0
    %1311 = vmatpush.msra.mxu0 %v897
    %1312 = vmatpush.msra.mxu0 %v896
    %1313 = vmatmul.f32.gmra.mxu0 %v1295
    %v1314 = vpop.f32.mrf.mxu0
    %v1315 = vadd.f32 0.0, %v1314
    %1316 = vdwg.mxu0
    %v1317 = vadd.f32 %v1291, %v1315
    %v1318 = vxor.u32 %v1317, 2147483648
    %v1319 = vmul.f32 %v1318, 1.442695
    %v1320 = vpow.pop %v1319
    %v1321 = vadd.f32 %v1320, 1.0
    %v1322 = vrcp.pop %v1321
    %v1323 = vmul.f32 %v1321, %v1322
    %v1324 = vsub.f32 1.0, %v1323
    %v1325 = vmul.f32 %v1322, %v1324
    %v1326 = vadd.f32 %v1322, %v1325
    %vm1327 = vweird.f32 %v1321
    %vm1328 = vweird.f32 %v1322
    %vm1329 = vmor %vm1327, %vm1328
    %v1330 = vsel %vm1329, %v1322, %v1326
    %v1331 = vand.u32 2147483647, %v1321
    %vm1332 = vcmp.eq.f32.partialorder %v1331, 8.507059e+37
    %v1333 = vand.u32 %v1321, 2147483648
    %v1334 = vor.u32 1.1754944e-38, %v1333
    %v1335 = vsel %vm1332, %v1334, %v1330
    %v1336 = vmul.f32 1.0, %v1335
    %v1337 = vtanh.pop %v1317
    %v1338 = vmul.f32 %v1336, %v1282
    %1340 = vrot.lane.b32.xlu0 %v1337, 80
    %v1341 = vpop.permute.xlu0 %1340
    %v1343 = vmul.f32 %v1336, %v1341
    %1345 = vrot.lane.b32.xlu0 %v1343, 16
    %v1346 = vpop.permute.xlu0 %1345
    %v1348 = vadd.f32 %v1338, %v1346
    %v1349 = vtanh.pop %v1348
    %1351 = vrot.lane.b32.xlu0 %v1349, 16
    %v1352 = vpop.permute.xlu0 %1351
    %v1354 = vmul.f32 %v1336, %v1352
    %s1355 = scalar_lea.vmem [#allocation3], 56
    %v1356 = vld [vmem:[%s1355] sm:$0xff]
    %v1357 = vadd.f32 %v1356, %v806
    %1359 = vrot.lane.b32.xlu0 %v1354, 96
    %v1360 = vpop.permute.xlu0 %1359
    %v1361 = vsel %vm898, %v1360, 0
    %1363 = vmatpush.msra.mxu0 0.0
    %1364 = vmatpush.msra.mxu0 0.0
    %1365 = vmatpush.msra.mxu0 0.0
    %1366 = vmatpush.msra.mxu0 0.0
    %1367 = vmatpush.msra.mxu0 0.0
    %1368 = vmatpush.msra.mxu0 0.0
    %1369 = vmatpush.msra.mxu0 0.0
    %1370 = vmatpush.msra.mxu0 0.0
    %1371 = vmatpush.msra.mxu0 0.0
    %1372 = vmatpush.msra.mxu0 0.0
    %1373 = vmatpush.msra.mxu0 0.0
    %1374 = vmatpush.msra.mxu0 0.0
    %1375 = vmatpush.msra.mxu0 0.0
    %1376 = vmatpush.msra.mxu0 0.0
    %1377 = vmatpush.msra.mxu0 %v897
    %1378 = vmatpush.msra.mxu0 %v896
    %1379 = vmatmul.f32.gmra.mxu0 %v1361
    %v1380 = vpop.f32.mrf.mxu0
    %v1381 = vadd.f32 0.0, %v1380
    %1382 = vdwg.mxu0
    %v1383 = vadd.f32 %v1357, %v1381
    %v1384 = vxor.u32 %v1383, 2147483648
    %v1385 = vmul.f32 %v1384, 1.442695
    %v1386 = vpow.pop %v1385
    %v1387 = vadd.f32 %v1386, 1.0
    %v1388 = vrcp.pop %v1387
    %v1389 = vmul.f32 %v1387, %v1388
    %v1390 = vsub.f32 1.0, %v1389
    %v1391 = vmul.f32 %v1388, %v1390
    %v1392 = vadd.f32 %v1388, %v1391
    %vm1393 = vweird.f32 %v1387
    %vm1394 = vweird.f32 %v1388
    %vm1395 = vmor %vm1393, %vm1394
    %v1396 = vsel %vm1395, %v1388, %v1392
    %v1397 = vand.u32 2147483647, %v1387
    %vm1398 = vcmp.eq.f32.partialorder %v1397, 8.507059e+37
    %v1399 = vand.u32 %v1387, 2147483648
    %v1400 = vor.u32 1.1754944e-38, %v1399
    %v1401 = vsel %vm1398, %v1400, %v1396
    %v1402 = vmul.f32 1.0, %v1401
    %v1403 = vtanh.pop %v1383
    %v1404 = vmul.f32 %v1402, %v1348
    %1406 = vrot.lane.b32.xlu0 %v1403, 80
    %v1407 = vpop.permute.xlu0 %1406
    %v1409 = vmul.f32 %v1402, %v1407
    %1411 = vrot.lane.b32.xlu0 %v1409, 16
    %v1412 = vpop.permute.xlu0 %1411
    %v1414 = vadd.f32 %v1404, %v1412
    %v1415 = vtanh.pop %v1414
    %1417 = vrot.lane.b32.xlu0 %v1415, 16
    %v1418 = vpop.permute.xlu0 %1417
    %v1420 = vmul.f32 %v1402, %v1418
    %v1421 = vld [vmem:[#allocation2 + $0x38] sm:$0xff]
    %v1422 = vld [vmem:[#allocation5] sm:$0xff]
    %v1423 = vld [vmem:[#allocation5 + $0x8] sm:$0xff]
    %v1424 = vld [vmem:[#allocation5 + $0x10] sm:$0xff]
    %v1425 = vld [vmem:[#allocation5 + $0x18] sm:$0xff]
    %v1426 = vld [vmem:[%s9] sm:$0x1]
    %v1428 = vperm.slane %v1426, 0
    %v1431 = vsel %vm116, %v1421, 0
    %1433 = vmatpush.msra.mxu0 0.0
    %1434 = vmatpush.msra.mxu0 0.0
    %1435 = vmatpush.msra.mxu0 0.0
    %1436 = vmatpush.msra.mxu0 0.0
    %1437 = vmatpush.msra.mxu0 0.0
    %1438 = vmatpush.msra.mxu0 0.0
    %1439 = vmatpush.msra.mxu0 0.0
    %1440 = vmatpush.msra.mxu0 0.0
    %1441 = vmatpush.msra.mxu0 0.0
    %1442 = vmatpush.msra.mxu0 0.0
    %1443 = vmatpush.msra.mxu0 0.0
    %1444 = vmatpush.msra.mxu0 0.0
    %1445 = vmatpush.msra.mxu0 %v1425
    %1446 = vmatpush.msra.mxu0 %v1424
    %1447 = vmatpush.msra.mxu0 %v1423
    %1448 = vmatpush.msra.mxu0 %v1422
    %1449 = vmatmul.f32.gmra.mxu0 %v1431
    %v1450 = vpop.f32.mrf.mxu0
    %v1451 = vadd.f32 %v1428, %v1450
    %1452 = vdwg.mxu0
    %v1453 = vxor.u32 %v1451, 2147483648
    %v1454 = vmul.f32 %v1453, 1.442695
    %v1455 = vpow.pop %v1454
    %v1456 = vadd.f32 %v1455, 1.0
    %v1457 = vrcp.pop %v1456
    %v1458 = vmul.f32 %v1456, %v1457
    %v1459 = vsub.f32 1.0, %v1458
    %v1460 = vmul.f32 %v1457, %v1459
    %v1461 = vadd.f32 %v1457, %v1460
    %vm1462 = vweird.f32 %v1456
    %vm1463 = vweird.f32 %v1457
    %vm1464 = vmor %vm1462, %vm1463
    %v1465 = vsel %vm1464, %v1457, %v1461
    %v1466 = vand.u32 2147483647, %v1456
    %vm1467 = vcmp.eq.f32.partialorder %v1466, 8.507059e+37
    %v1468 = vand.u32 %v1456, 2147483648
    %v1469 = vor.u32 1.1754944e-38, %v1468
    %v1470 = vsel %vm1467, %v1469, %v1465
    %v1471 = vmul.f32 1.0, %v1470
    %v1472 = vtanh.pop %v1451
    %1474 = vrot.lane.b32.xlu0 %v1472, 80
    %v1475 = vpop.permute.xlu0 %1474
    %v1477 = vmul.f32 %v1471, %v1475
    %v1478 = vtanh.pop %v1477
    %1480 = vrot.lane.b32.xlu0 %v1478, 32
    %v1481 = vpop.permute.xlu0 %1480
    %v1483 = vmul.f32 %v1471, %v1481
    %v1484 = vld [vmem:[%s10] sm:$0xff]
    %v1485 = vld [vmem:[%s10 + $0x8] sm:$0xff]
    %v1486 = vld [vmem:[%s11] sm:$0xff]
    %v1487 = vld [vmem:[%s11 + $0x8] sm:$0xff]
    %1489 = vrot.lane.b32.xlu0 %v1483, 96
    %v1490 = vpop.permute.xlu0 %1489
    %v1491 = vsel %vm898, %v1490, 0
    %1493 = vmatpush.msra.mxu0 0.0
    %1494 = vmatpush.msra.mxu0 0.0
    %1495 = vmatpush.msra.mxu0 0.0
    %1496 = vmatpush.msra.mxu0 0.0
    %1497 = vmatpush.msra.mxu0 0.0
    %1498 = vmatpush.msra.mxu0 0.0
    %1499 = vmatpush.msra.mxu0 0.0
    %1500 = vmatpush.msra.mxu0 0.0
    %1501 = vmatpush.msra.mxu0 0.0
    %1502 = vmatpush.msra.mxu0 0.0
    %1503 = vmatpush.msra.mxu0 0.0
    %1504 = vmatpush.msra.mxu0 0.0
    %1505 = vmatpush.msra.mxu0 0.0
    %1506 = vmatpush.msra.mxu0 0.0
    %1507 = vmatpush.msra.mxu0 %v1487
    %1508 = vmatpush.msra.mxu0 %v1486
    %1509 = vmatmul.f32.gmra.mxu0 %v1491
    %v1510 = vpop.f32.mrf.mxu0
    %v1511 = vadd.f32 0.0, %v1510
    %1512 = vdwg.mxu0
    %1514 = vrot.lane.b32.xlu0 %v1420, 96
    %v1515 = vpop.permute.xlu0 %1514
    %v1516 = vsel %vm898, %v1515, 0
    %1518 = vmatpush.msra.mxu0 0.0
    %1519 = vmatpush.msra.mxu0 0.0
    %1520 = vmatpush.msra.mxu0 0.0
    %1521 = vmatpush.msra.mxu0 0.0
    %1522 = vmatpush.msra.mxu0 0.0
    %1523 = vmatpush.msra.mxu0 0.0
    %1524 = vmatpush.msra.mxu0 0.0
    %1525 = vmatpush.msra.mxu0 0.0
    %1526 = vmatpush.msra.mxu0 0.0
    %1527 = vmatpush.msra.mxu0 0.0
    %1528 = vmatpush.msra.mxu0 0.0
    %1529 = vmatpush.msra.mxu0 0.0
    %1530 = vmatpush.msra.mxu0 0.0
    %1531 = vmatpush.msra.mxu0 0.0
    %1532 = vmatpush.msra.mxu0 %v1485
    %1533 = vmatpush.msra.mxu0 %v1484
    %1534 = vmatmul.f32.gmra.mxu0 %v1516
    %v1535 = vpop.f32.mrf.mxu0
    %v1536 = vadd.f32 %v1511, %v1535
    %1537 = vdwg.mxu0
    %v1538 = vld [vmem:[#allocation4] sm:$0x1]
    %v1540 = vperm.slane %v1538, 0
    %v1542 = vadd.f32 %v1536, %v1540
    %v1543 = vxor.u32 %v1542, 2147483648
    %v1544 = vmul.f32 %v1543, 1.442695
    %v1545 = vpow.pop %v1544
    %v1546 = vadd.f32 %v1545, 1.0
    %v1547 = vrcp.pop %v1546
    %v1548 = vmul.f32 %v1546, %v1547
    %v1549 = vsub.f32 1.0, %v1548
    %v1550 = vmul.f32 %v1547, %v1549
    %v1551 = vadd.f32 %v1547, %v1550
    %vm1552 = vweird.f32 %v1546
    %vm1553 = vweird.f32 %v1547
    %vm1554 = vmor %vm1552, %vm1553
    %v1555 = vsel %vm1554, %v1547, %v1551
    %v1556 = vand.u32 2147483647, %v1546
    %vm1557 = vcmp.eq.f32.partialorder %v1556, 8.507059e+37
    %v1558 = vand.u32 %v1546, 2147483648
    %v1559 = vor.u32 1.1754944e-38, %v1558
    %v1560 = vsel %vm1557, %v1559, %v1555
    %v1561 = vmul.f32 1.0, %v1560
    %vm1562 = vcmask 7168
    %1563 = vst.msk [vmem:[%s16] sm:$0xff] %vm1562, %v1561
    %v1564 = vld [vmem:[%s13] sm:$0xff]
    %v1565 = vld [vmem:[%s13 + $0x8] sm:$0xff]
    %v1566 = vld [vmem:[#allocation8] sm:$0xff]
    %v1567 = vld [vmem:[#allocation8 + $0x8] sm:$0xff]
    %1568 = vmatpush.msra.mxu0 0.0
    %1569 = vmatpush.msra.mxu0 0.0
    %1570 = vmatpush.msra.mxu0 0.0
    %1571 = vmatpush.msra.mxu0 0.0
    %1572 = vmatpush.msra.mxu0 0.0
    %1573 = vmatpush.msra.mxu0 0.0
    %1574 = vmatpush.msra.mxu0 0.0
    %1575 = vmatpush.msra.mxu0 0.0
    %1576 = vmatpush.msra.mxu0 0.0
    %1577 = vmatpush.msra.mxu0 0.0
    %1578 = vmatpush.msra.mxu0 0.0
    %1579 = vmatpush.msra.mxu0 0.0
    %1580 = vmatpush.msra.mxu0 0.0
    %1581 = vmatpush.msra.mxu0 0.0
    %1582 = vmatpush.msra.mxu0 %v1567
    %1583 = vmatpush.msra.mxu0 %v1566
    %1584 = vmatmul.f32.gmra.mxu0 %v1491
    %v1585 = vpop.f32.mrf.mxu0
    %v1586 = vadd.f32 0.0, %v1585
    %1587 = vdwg.mxu0
    %1588 = vmatpush.msra.mxu0 0.0
    %1589 = vmatpush.msra.mxu0 0.0
    %1590 = vmatpush.msra.mxu0 0.0
    %1591 = vmatpush.msra.mxu0 0.0
    %1592 = vmatpush.msra.mxu0 0.0
    %1593 = vmatpush.msra.mxu0 0.0
    %1594 = vmatpush.msra.mxu0 0.0
    %1595 = vmatpush.msra.mxu0 0.0
    %1596 = vmatpush.msra.mxu0 0.0
    %1597 = vmatpush.msra.mxu0 0.0
    %1598 = vmatpush.msra.mxu0 0.0
    %1599 = vmatpush.msra.mxu0 0.0
    %1600 = vmatpush.msra.mxu0 0.0
    %1601 = vmatpush.msra.mxu0 0.0
    %1602 = vmatpush.msra.mxu0 %v1565
    %1603 = vmatpush.msra.mxu0 %v1564
    %1604 = vmatmul.f32.gmra.mxu0 %v1516
    %v1605 = vpop.f32.mrf.mxu0
    %v1606 = vadd.f32 %v1586, %v1605
    %1607 = vdwg.mxu0
    %v1608 = vld [vmem:[%s15] sm:$0x1]
    %v1610 = vperm.slane %v1608, 0
    %v1612 = vadd.f32 %v1606, %v1610
    %1613 = vst [vmem:[#allocation10] sm:$0xff] %v1612
    // Predicated region
    $region74: #{tpu_custom_call.1} parent=1 // pred_check
      _
    $region75: #{tpu_custom_call.1} parent=1 // pred_check_branch
      %1615 = sbr.rel (0) target = $region77
    $region76: #{tpu_custom_call.1} parent=1 // pred_region
      _
    $region77: #{tpu_custom_call.1} parent=1 // pred_fallthru
      _
    // Predicated region
    $region78: #{tpu_custom_call.1} parent=1 // pred_check
      _
    $region79: #{tpu_custom_call.1} parent=1 // pred_check_branch
      %1617 = sbr.rel (0) target = $region81
    $region80: #{tpu_custom_call.1} parent=1 // pred_region
      %1619 = vsyncadd [#allocation7], 0
      %s1621 = sshll.u32 [#allocation10], 4
      %s1622 = int_to_ptr.vmem [resolvable:$true] %s1621
      %s1623 = sshll.u32 %s17, 4
      %s1624 = int_to_ptr.hbm [resolvable:$true] %s1623
      %1626 = dma.vmem_to_hbm [thread:$0]  %s1622, 128, %s1624, [#allocation7]
    $region81: #{tpu_custom_call.1} parent=1 // pred_fallthru
      _
    // Predicated region
    $region82: #{tpu_custom_call.1} parent=1 // pred_check
      _
    $region83: #{tpu_custom_call.1} parent=1 // pred_check_branch
      %1628 = sbr.rel (0) target = $region85
    $region84: #{tpu_custom_call.1} parent=1 // pred_region
      _
    $region85: #{tpu_custom_call.1} parent=1 // pred_fallthru
      _
    // Predicated region
    $region86: #{tpu_custom_call.1} parent=1 // pred_check
      _
    $region87: #{tpu_custom_call.1} parent=1 // pred_check_branch
      %1630 = sbr.rel (0) target = $region89
    $region88: #{tpu_custom_call.1} parent=1 // pred_region
      %1632 = dma.done [#allocation7], 128
    $region89: #{tpu_custom_call.1} parent=1 // pred_fallthru
      _
    %1633 = vsyncpa [#allocation6], 1
    %1634 = vsyncpa [#allocation9], 1
    %1635 = vsyncpa [#allocation7], 1

</llo_original>
